<compile_context>
chip_gen: v7x
topology: tpu7x:2x2x1
jax: 0.10.0
libtpu: 0.0.40
codegen_flags: <defaults>
</compile_context>

<pallas_src>
import math
import functools

import jax
import jax.numpy as jnp
from jax import lax
from jax.experimental import pallas as pl
from jax.experimental.pallas import tpu as pltpu


# ---------------------------------------------------------------------------
# Fused kernel: per-batch K/V projection (cached across q-tiles) + per-q-tile
# Q projection + per-head softmax attention + fused output projection.
# ---------------------------------------------------------------------------
def _mha_kernel(q_ref, k_ref, v_ref, wq_ref, wkT_ref, wv_ref, woT_ref, o_ref,
                khT_ref, vh_ref, ctx_ref, *, n_heads, cache_kv):
    # q : (TQ, D)  k/v : (S, D)  wq/wv : (D, H*E)  wkT : (H*E, D)  woT : (H*E, D_out)
    # khT scratch : (H*E, S)  vh scratch : (S, H*E)  ctx scratch : (TQ, H*E) f32
    f32 = jnp.float32
    cd = wq_ref.dtype                     # MXU compute dtype; accumulation is f32
    HE = wq_ref.shape[-1]
    E = HE // n_heads

    def project_kv():
        # Cast activations in-kernel (no wrapper-side HBM cast pass).
        k_cd = k_ref[...].astype(cd)
        v_cd = v_ref[...].astype(cd)
        # khT = (Wk^T) @ K^T computed directly as (H*E, S): contract D with K as the
        # SECOND operand, so the only K relayout happens once per batch, not per head.
        khT = lax.dot_general(wkT_ref[...], k_cd, (((1,), (1,)), ((), ())),
                              preferred_element_type=f32)        # (H*E, S)
        vh = jnp.dot(v_cd, wv_ref[...], preferred_element_type=f32)  # (S, H*E)
        khT_ref[...] = khT.astype(cd)
        vh_ref[...] = vh.astype(cd)

    if cache_kv:
        # K/V blocks depend only on the batch index -> project once per batch
        # (q-tile axis is "arbitrary", scratch persists across it).
        pl.when(pl.program_id(1) == 0)(project_kv)
    else:
        project_kv()

    # Q projection for this tile, all heads at once (softmax scale folded into Wq).
    qh = jnp.dot(q_ref[...].astype(cd), wq_ref[...],
                 preferred_element_type=f32).astype(cd)          # (TQ, H*E)

    for h in range(n_heads):                                     # static unroll
        lo, hi = h * E, (h + 1) * E
        # Plain MXU matmul: (TQ, E) @ (E, S); khT row slice is sublane-aligned.
        s = jnp.dot(qh[:, lo:hi], khT_ref[lo:hi, :],
                    preferred_element_type=f32)                  # (TQ, S)
        m = jnp.max(s, axis=-1, keepdims=True)                   # f32 softmax stats
        p = jnp.exp(s - m)
        denom = jnp.sum(p, axis=-1, keepdims=True)
        ctx = jnp.dot(p.astype(cd), vh_ref[:, lo:hi],
                      preferred_element_type=f32)                # (TQ, E)
        # Normalize the small (TQ, E) context, not the (TQ, S) matrix; write into the
        # lane-dense concat scratch (bounds live ranges vs. a Python list + concat).
        ctx_ref[:, lo:hi] = ctx * pl.reciprocal(denom, approx=False)

    # Fused output projection (Wo pre-transposed once in the wrapper).
    o_ref[...] = jnp.dot(ctx_ref[...].astype(cd), woT_ref[...],
                         preferred_element_type=f32).astype(o_ref.dtype)


def _pick_q_tile(s, max_tile=512):
    """Largest divisor of S that is <= max_tile, preferring 256/8 multiples."""
    if s <= max_tile:
        return s
    divs = [t for t in range(1, max_tile + 1) if s % t == 0]
    return max(divs, key=lambda t: (t % 256 == 0, t % 8 == 0, t))


# ---------------------------------------------------------------------------
# Wrapper: weight prep (concat heads, fold scale, pre-transpose Wk/Wo) + pallas_call
# ---------------------------------------------------------------------------
def multi_head_attention(queries, keys, values, params, *,
                         compute_dtype=jnp.bfloat16, out_dtype=None, max_q_tile=512):
    """Matches MultiHeadAttention.forward: concat over heads (dim=-1) then Linear."""
    wq, wk, wv, wo = params["wq"], params["wk"], params["wv"], params["wo"]
    H, D, E = wq.shape
    B, S, _ = queries.shape
    D_out = wo.shape[0]
    HE = H * E
    scale = 1.0 / math.sqrt(E)
    out_dtype = jnp.dtype(queries.dtype) if out_dtype is None else jnp.dtype(out_dtype)

    # One-time weight prep (layout + scale folding; done by XLA outside the kernel).
    cd = jnp.dtype(compute_dtype)
    wq_cat = (jnp.transpose(wq, (1, 0, 2)).reshape(D, HE) * scale).astype(cd)
    wkT = jnp.transpose(wk, (0, 2, 1)).reshape(HE, D).astype(cd)   # (H*E, D)
    wv_cat = jnp.transpose(wv, (1, 0, 2)).reshape(D, HE).astype(cd)
    woT = wo.T.astype(cd)                                          # (H*E, D_out)

    # q-tile axis (keeps per-step score matrix at (TQ, S) instead of (S, S)).
    TQ = _pick_q_tile(S, max_q_tile)
    NQ = S // TQ

    if B > 1 or NQ == 1:
        # Batch axis parallel (feeds both v7x TensorCores when B >= 2); q-tile axis
        # "arbitrary" so the per-batch K/V projection cache in scratch is legal.
        cache_kv = True
        grid = (B, NQ)
        dims = ("parallel", "arbitrary")
        q_spec = pl.BlockSpec((None, TQ, D), lambda b, qi: (b, qi, 0))
        kv_map = lambda b, qi: (b, 0, 0)
        w_map = lambda b, qi: (0, 0)
        out_spec = pl.BlockSpec((None, TQ, D_out), lambda b, qi: (b, qi, 0))
    else:
        # B == 1 with several q-tiles: make the q-tile axis the (only) parallel axis
        # so both v7x TensorCores stay busy; K/V are re-projected per tile (no scratch
        # carry across a "parallel" axis).
        cache_kv = False
        grid = (NQ,)
        dims = ("parallel",)
        q_spec = pl.BlockSpec((None, TQ, D), lambda qi: (0, qi, 0))
        kv_map = lambda qi: (0, 0, 0)
        w_map = lambda qi: (0, 0)
        out_spec = pl.BlockSpec((None, TQ, D_out), lambda qi: (0, qi, 0))

    in_specs = [
        q_spec,
        pl.BlockSpec((None, S, D), kv_map),     # K, full sequence per batch
        pl.BlockSpec((None, S, D), kv_map),     # V
        # Constant-index weights: single-buffered (double-buffering wastes VMEM).
        pl.BlockSpec((D, HE), w_map, pipeline_mode=pl.Buffered(1)),
        pl.BlockSpec((HE, D), w_map, pipeline_mode=pl.Buffered(1)),
        pl.BlockSpec((D, HE), w_map, pipeline_mode=pl.Buffered(1)),
        pl.BlockSpec((HE, D_out), w_map, pipeline_mode=pl.Buffered(1)),
    ]
    scratch_shapes = [
        pltpu.VMEM((HE, S), cd),            # khT (cached K projection, transposed)
        pltpu.VMEM((S, HE), cd),            # vh  (cached V projection)
        pltpu.VMEM((TQ, HE), jnp.float32),  # per-q-tile head-concat context
    ]

    # Per-generation VMEM limit (~80% of physical: ~51 MiB on v7x, ~102 MiB v5e/v6e).
    try:
        vmem_cap = int(pltpu.get_tpu_info().vmem_capacity_bytes)
    except Exception:  # pragma: no cover - conservative fallback
        vmem_cap = 64 * 1024 * 1024
    vmem_cap_budget = int(0.8 * vmem_cap)

    cd_size = cd.itemsize
    in_size = jnp.dtype(queries.dtype).itemsize
    osize = out_dtype.itemsize
    tile_bytes = (
        2 * TQ * D * in_size                      # double-buffered Q tile (orig dtype)
        + 2 * 2 * S * D * in_size                 # double-buffered K and V blocks
        + (3 * D * HE + HE * D_out) * cd_size     # single-buffered weights
        + 2 * TQ * D_out * osize                  # double-buffered output tile
        + 2 * S * HE * cd_size                    # khT / vh scratch
        + TQ * HE * 4                             # ctx scratch (f32)
        + (2 * TQ * S + 2 * S * HE + 2 * TQ * HE) * 4   # live f32 temporaries
    )
    vmem_limit = int(min(max(2 * tile_bytes, 8 * 1024 * 1024), vmem_cap_budget))

    flops = int(
        2 * B * S * D * HE            # Q projection
        + 2 * 2 * B * S * D * HE      # K and V projections (once per batch)
        + 2 * 2 * B * H * S * S * E   # QK^T + PV
        + 2 * B * S * HE * D_out      # output projection
    )
    transcendentals = int(B * H * S * S)
    bytes_accessed = int(
        3 * B * S * D * in_size
        + (3 * D * HE + HE * D_out) * cd_size
        + B * S * D_out * osize
    )

    return pl.pallas_call(
        functools.partial(_mha_kernel, n_heads=H, cache_kv=cache_kv),
        out_shape=jax.ShapeDtypeStruct((B, S, D_out), out_dtype),
        grid_spec=pltpu.PrefetchScalarGridSpec(
            num_scalar_prefetch=0,
            grid=grid,
            in_specs=in_specs,
            out_specs=out_spec,
            scratch_shapes=scratch_shapes,
        ),
        compiler_params=pltpu.CompilerParams(
            dimension_semantics=dims,
            vmem_limit_bytes=vmem_limit,
        ),
        cost_estimate=pl.CostEstimate(
            flops=flops,
            transcendentals=transcendentals,
            bytes_accessed=bytes_accessed,
        ),
    )(queries, keys, values, wq_cat, wkT, wv_cat, woT)


# ---------------------------------------------------------------------------
# Params + pure-JAX reference
# ---------------------------------------------------------------------------
def init_params(key, model_dim, n_heads):
    emb = model_dim // n_heads
    k1, k2, k3, k4 = jax.random.split(key, 4)
    scale = 1.0 / math.sqrt(model_dim)
    return {
        "wq": jax.random.normal(k1, (n_heads, model_dim, emb), jnp.float32) * scale,
        "wk": jax.random.normal(k2, (n_heads, model_dim, emb), jnp.float32) * scale,
        "wv": jax.random.normal(k3, (n_heads, model_dim, emb), jnp.float32) * scale,
        "wo": jax.random.normal(k4, (model_dim, model_dim), jnp.float32) * scale,
    }


def _reference(queries, keys, values, params):
    """Pure-JAX f32 reference for correctness checking."""
    wq, wk, wv, wo = params["wq"], params["wk"], params["wv"], params["wo"]
    outs = []
    E = wq.shape[-1]
    for h in range(wq.shape[0]):
        qh = queries @ wq[h]
        kh = keys @ wk[h]
        vh = values @ wv[h]
        s = (qh @ jnp.swapaxes(kh, -1, -2)) / math.sqrt(E)
        a = jax.nn.softmax(s, axis=-1)
        outs.append(a @ vh)
    return jnp.concatenate(outs, axis=-1) @ wo.T


if __name__ == "__main__":
    model_dim = 32
    n_heads = 4
    batch, seq = 2, 8

    key = jax.random.PRNGKey(0)
    kq, kk, kv, kp = jax.random.split(key, 4)
    queries = jax.random.normal(kq, (batch, seq, model_dim), jnp.float32)
    keys = jax.random.normal(kk, (batch, seq, model_dim), jnp.float32)
    values = jax.random.normal(kv, (batch, seq, model_dim), jnp.float32)
    params = init_params(kp, model_dim, n_heads)

    ref = _reference(queries, keys, values, params)

    # f32 MXU path: tight check (exact softmax normalization, no approx reciprocal).
    out_f32 = jax.block_until_ready(
        multi_head_attention(queries, keys, values, params, compute_dtype=jnp.float32))
    assert out_f32.shape == (batch, seq, model_dim)
    assert jnp.allclose(out_f32, ref, atol=2e-3, rtol=2e-3), "f32 kernel mismatch vs reference"

    # bf16 MXU path (default; higher MXU throughput, softmax stats stay f32).
    out_bf16 = jax.block_until_ready(
        multi_head_attention(queries, keys, values, params))
    assert out_bf16.shape == (batch, seq, model_dim)
    assert jnp.allclose(out_bf16, ref, atol=1e-1, rtol=5e-2), "bf16 kernel mismatch vs reference"

    print("KERNEL_OK")
</pallas_src>

<mosaic_0001>
module attributes {stable_mosaic.version = 11 : i64} {
  func.func @_mha_kernel(%arg0: i32, %arg1: i32, %arg2: memref<1x8x32xf32, #tpu.memory_space<vmem>>, %arg3: memref<1x8x32xf32, #tpu.memory_space<vmem>>, %arg4: memref<1x8x32xf32, #tpu.memory_space<vmem>>, %arg5: memref<32x32xf32, #tpu.memory_space<vmem>>, %arg6: memref<32x32xf32, #tpu.memory_space<vmem>>, %arg7: memref<32x32xf32, #tpu.memory_space<vmem>>, %arg8: memref<32x32xf32, #tpu.memory_space<vmem>>, %arg9: memref<1x8x32xf32, #tpu.memory_space<vmem>>, %arg10: memref<32x8xf32, #tpu.memory_space<vmem>>, %arg11: memref<8x32xf32, #tpu.memory_space<vmem>>, %arg12: memref<8x32xf32, #tpu.memory_space<vmem>>) attributes {dimension_semantics = [#tpu.dimension_semantics<parallel>, #tpu.dimension_semantics<arbitrary>], iteration_bounds = array<i64: 2, 1>, scalar_prefetch = 0 : i64, scratch_operands = 3 : i64, tpu.core_type = #tpu.core_type<tc>, window_params = [{transform_indices = @transform_0, window_bounds = array<i64: 1, 8, 32>}, {transform_indices = @transform_1, window_bounds = array<i64: 1, 8, 32>}, {transform_indices = @transform_2, window_bounds = array<i64: 1, 8, 32>}, {pipeline_mode = #tpu.pipeline_mode<synchronous>, transform_indices = @transform_3, window_bounds = array<i64: 32, 32>}, {pipeline_mode = #tpu.pipeline_mode<synchronous>, transform_indices = @transform_4, window_bounds = array<i64: 32, 32>}, {pipeline_mode = #tpu.pipeline_mode<synchronous>, transform_indices = @transform_5, window_bounds = array<i64: 32, 32>}, {pipeline_mode = #tpu.pipeline_mode<synchronous>, transform_indices = @transform_6, window_bounds = array<i64: 32, 32>}, {transform_indices = @transform_7, window_bounds = array<i64: 1, 8, 32>}]} {
    %c0_i32 = arith.constant 0 : i32
    %0 = arith.cmpi eq, %arg1, %c0_i32 : i32
    %1 = arith.extui %0 : i1 to i32
    %c0_i32_0 = arith.constant 0 : i32
    %2 = arith.cmpi ne, %1, %c0_i32_0 : i32
    scf.if %2 {
      %c0_50 = arith.constant 0 : index
      %c0_51 = arith.constant 0 : index
      %c0_52 = arith.constant 0 : index
      %77 = vector.load %arg3[%c0_50, %c0_51, %c0_52] : memref<1x8x32xf32, #tpu.memory_space<vmem>>, vector<1x8x32xf32>
      %78 = vector.shape_cast %77 : vector<1x8x32xf32> to vector<8x32xf32>
      %c0_53 = arith.constant 0 : index
      %c0_54 = arith.constant 0 : index
      %c0_55 = arith.constant 0 : index
      %79 = vector.load %arg4[%c0_53, %c0_54, %c0_55] : memref<1x8x32xf32, #tpu.memory_space<vmem>>, vector<1x8x32xf32>
      %80 = vector.shape_cast %79 : vector<1x8x32xf32> to vector<8x32xf32>
      %c0_56 = arith.constant 0 : index
      %c0_57 = arith.constant 0 : index
      %81 = vector.load %arg6[%c0_56, %c0_57] : memref<32x32xf32, #tpu.memory_space<vmem>>, vector<32x32xf32>
      %cst_58 = arith.constant dense<0.000000e+00> : vector<32x8xf32>
      %82 = tpu.matmul %81, %78, %cst_58 {dimension_numbers = #tpu.dot_dimension_numbers<[1], [1], [0], [0], [0, 0, 1, 0], [], []>} : vector<32x32xf32>, vector<8x32xf32>, vector<32x8xf32> -> vector<32x8xf32>
      %c0_59 = arith.constant 0 : index
      %c0_60 = arith.constant 0 : index
      %83 = vector.load %arg7[%c0_59, %c0_60] : memref<32x32xf32, #tpu.memory_space<vmem>>, vector<32x32xf32>
      %cst_61 = arith.constant dense<0.000000e+00> : vector<8x32xf32>
      %84 = tpu.matmul %80, %83, %cst_61 {dimension_numbers = #tpu.dot_dimension_numbers<[1], [0], [0], [1], [0, 0, 1, 1], [], []>} : vector<8x32xf32>, vector<32x32xf32>, vector<8x32xf32> -> vector<8x32xf32>
      %c0_62 = arith.constant 0 : index
      %c0_63 = arith.constant 0 : index
      %85 = vector.load %arg10[%c0_62, %c0_63] : memref<32x8xf32, #tpu.memory_space<vmem>>, vector<32x8xf32>
      tpu.vector_store %arg10[%c0_62, %c0_63], %82 {strides = array<i32>} : memref<32x8xf32, #tpu.memory_space<vmem>>, vector<32x8xf32>,
      %c0_64 = arith.constant 0 : index
      %c0_65 = arith.constant 0 : index
      %86 = vector.load %arg11[%c0_64, %c0_65] : memref<8x32xf32, #tpu.memory_space<vmem>>, vector<8x32xf32>
      tpu.vector_store %arg11[%c0_64, %c0_65], %84 {strides = array<i32>} : memref<8x32xf32, #tpu.memory_space<vmem>>, vector<8x32xf32>,
    } else {
    }
    %c0 = arith.constant 0 : index
    %c0_1 = arith.constant 0 : index
    %c0_2 = arith.constant 0 : index
    %3 = vector.load %arg2[%c0, %c0_1, %c0_2] : memref<1x8x32xf32, #tpu.memory_space<vmem>>, vector<1x8x32xf32>
    %4 = vector.shape_cast %3 : vector<1x8x32xf32> to vector<8x32xf32>
    %c0_3 = arith.constant 0 : index
    %c0_4 = arith.constant 0 : index
    %5 = vector.load %arg5[%c0_3, %c0_4] : memref<32x32xf32, #tpu.memory_space<vmem>>, vector<32x32xf32>
    %cst = arith.constant dense<0.000000e+00> : vector<8x32xf32>
    %6 = tpu.matmul %4, %5, %cst {dimension_numbers = #tpu.dot_dimension_numbers<[1], [0], [0], [1], [0, 0, 1, 1], [], []>} : vector<8x32xf32>, vector<32x32xf32>, vector<8x32xf32> -> vector<8x32xf32>
    %7 = vector.extract_strided_slice %6 {offsets = [0, 0], sizes = [8, 8], strides = [1, 1]} : vector<8x32xf32> to vector<8x8xf32>
    %c0_5 = arith.constant 0 : index
    %c0_6 = arith.constant 0 : index
    %8 = vector.load %arg10[%c0_5, %c0_6] : memref<32x8xf32, #tpu.memory_space<vmem>>, vector<8x8xf32>
    %cst_7 = arith.constant dense<0.000000e+00> : vector<8x8xf32>
    %9 = tpu.matmul %7, %8, %cst_7 {dimension_numbers = #tpu.dot_dimension_numbers<[1], [0], [0], [1], [0, 0, 1, 1], [], []>} : vector<8x8xf32>, vector<8x8xf32>, vector<8x8xf32> -> vector<8x8xf32>
    %cst_8 = arith.constant dense<0xFF800000> : vector<8xf32>
    %10 = vector.multi_reduction <maximumf>, %9, %cst_8 [1] : vector<8x8xf32> to vector<8xf32>
    %11 = vector.shape_cast %10 : vector<8xf32> to vector<8x1xf32>
    %12 = vector.broadcast %11 : vector<8x1xf32> to vector<8x8xf32>
    %13 = arith.subf %9, %12 : vector<8x8xf32>
    %14 = math.exp %13 : vector<8x8xf32>
    %cst_9 = arith.constant dense<0.000000e+00> : vector<8xf32>
    %15 = vector.multi_reduction <add>, %14, %cst_9 [1] : vector<8x8xf32> to vector<8xf32>
    %16 = vector.shape_cast %15 : vector<8xf32> to vector<8x1xf32>
    %c0_10 = arith.constant 0 : index
    %c0_11 = arith.constant 0 : index
    %17 = vector.load %arg11[%c0_10, %c0_11] : memref<8x32xf32, #tpu.memory_space<vmem>>, vector<8x8xf32>
    %cst_12 = arith.constant dense<0.000000e+00> : vector<8x8xf32>
    %18 = tpu.matmul %14, %17, %cst_12 {dimension_numbers = #tpu.dot_dimension_numbers<[1], [0], [0], [1], [0, 0, 1, 1], [], []>} : vector<8x8xf32>, vector<8x8xf32>, vector<8x8xf32> -> vector<8x8xf32>
    %19 = tpu.reciprocal %16 : vector<8x1xf32> -> vector<8x1xf32>
    %20 = vector.broadcast %19 : vector<8x1xf32> to vector<8x8xf32>
    %21 = arith.mulf %18, %20 : vector<8x8xf32>
    %c0_13 = arith.constant 0 : index
    %c0_14 = arith.constant 0 : index
    %22 = vector.load %arg12[%c0_13, %c0_14] : memref<8x32xf32, #tpu.memory_space<vmem>>, vector<8x8xf32>
    tpu.vector_store %arg12[%c0_13, %c0_14], %21 {strides = array<i32>} : memref<8x32xf32, #tpu.memory_space<vmem>>, vector<8x8xf32>,
    %23 = vector.extract_strided_slice %6 {offsets = [0, 8], sizes = [8, 8], strides = [1, 1]} : vector<8x32xf32> to vector<8x8xf32>
    %c8 = arith.constant 8 : index
    %c0_15 = arith.constant 0 : index
    %24 = vector.load %arg10[%c8, %c0_15] : memref<32x8xf32, #tpu.memory_space<vmem>>, vector<8x8xf32>
    %cst_16 = arith.constant dense<0.000000e+00> : vector<8x8xf32>
    %25 = tpu.matmul %23, %24, %cst_16 {dimension_numbers = #tpu.dot_dimension_numbers<[1], [0], [0], [1], [0, 0, 1, 1], [], []>} : vector<8x8xf32>, vector<8x8xf32>, vector<8x8xf32> -> vector<8x8xf32>
    %cst_17 = arith.constant dense<0xFF800000> : vector<8xf32>
    %26 = vector.multi_reduction <maximumf>, %25, %cst_17 [1] : vector<8x8xf32> to vector<8xf32>
    %27 = vector.shape_cast %26 : vector<8xf32> to vector<8x1xf32>
    %28 = vector.broadcast %27 : vector<8x1xf32> to vector<8x8xf32>
    %29 = arith.subf %25, %28 : vector<8x8xf32>
    %30 = math.exp %29 : vector<8x8xf32>
    %cst_18 = arith.constant dense<0.000000e+00> : vector<8xf32>
    %31 = vector.multi_reduction <add>, %30, %cst_18 [1] : vector<8x8xf32> to vector<8xf32>
    %32 = vector.shape_cast %31 : vector<8xf32> to vector<8x1xf32>
    %c0_19 = arith.constant 0 : index
    %c8_20 = arith.constant 8 : index
    %33 = vector.load %arg11[%c0_19, %c8_20] : memref<8x32xf32, #tpu.memory_space<vmem>>, vector<8x8xf32>
    %cst_21 = arith.constant dense<0.000000e+00> : vector<8x8xf32>
    %34 = tpu.matmul %30, %33, %cst_21 {dimension_numbers = #tpu.dot_dimension_numbers<[1], [0], [0], [1], [0, 0, 1, 1], [], []>} : vector<8x8xf32>, vector<8x8xf32>, vector<8x8xf32> -> vector<8x8xf32>
    %35 = tpu.reciprocal %32 : vector<8x1xf32> -> vector<8x1xf32>
    %36 = vector.broadcast %35 : vector<8x1xf32> to vector<8x8xf32>
    %37 = arith.mulf %34, %36 : vector<8x8xf32>
    %c0_22 = arith.constant 0 : index
    %c8_23 = arith.constant 8 : index
    %38 = vector.load %arg12[%c0_22, %c8_23] : memref<8x32xf32, #tpu.memory_space<vmem>>, vector<8x8xf32>
    tpu.vector_store %arg12[%c0_22, %c8_23], %37 {strides = array<i32>} : memref<8x32xf32, #tpu.memory_space<vmem>>, vector<8x8xf32>,
    %39 = vector.extract_strided_slice %6 {offsets = [0, 16], sizes = [8, 8], strides = [1, 1]} : vector<8x32xf32> to vector<8x8xf32>
    %c16 = arith.constant 16 : index
    %c0_24 = arith.constant 0 : index
    %40 = vector.load %arg10[%c16, %c0_24] : memref<32x8xf32, #tpu.memory_space<vmem>>, vector<8x8xf32>
    %cst_25 = arith.constant dense<0.000000e+00> : vector<8x8xf32>
    %41 = tpu.matmul %39, %40, %cst_25 {dimension_numbers = #tpu.dot_dimension_numbers<[1], [0], [0], [1], [0, 0, 1, 1], [], []>} : vector<8x8xf32>, vector<8x8xf32>, vector<8x8xf32> -> vector<8x8xf32>
    %cst_26 = arith.constant dense<0xFF800000> : vector<8xf32>
    %42 = vector.multi_reduction <maximumf>, %41, %cst_26 [1] : vector<8x8xf32> to vector<8xf32>
    %43 = vector.shape_cast %42 : vector<8xf32> to vector<8x1xf32>
    %44 = vector.broadcast %43 : vector<8x1xf32> to vector<8x8xf32>
    %45 = arith.subf %41, %44 : vector<8x8xf32>
    %46 = math.exp %45 : vector<8x8xf32>
    %cst_27 = arith.constant dense<0.000000e+00> : vector<8xf32>
    %47 = vector.multi_reduction <add>, %46, %cst_27 [1] : vector<8x8xf32> to vector<8xf32>
    %48 = vector.shape_cast %47 : vector<8xf32> to vector<8x1xf32>
    %c0_28 = arith.constant 0 : index
    %c16_29 = arith.constant 16 : index
    %49 = vector.load %arg11[%c0_28, %c16_29] : memref<8x32xf32, #tpu.memory_space<vmem>>, vector<8x8xf32>
    %cst_30 = arith.constant dense<0.000000e+00> : vector<8x8xf32>
    %50 = tpu.matmul %46, %49, %cst_30 {dimension_numbers = #tpu.dot_dimension_numbers<[1], [0], [0], [1], [0, 0, 1, 1], [], []>} : vector<8x8xf32>, vector<8x8xf32>, vector<8x8xf32> -> vector<8x8xf32>
    %51 = tpu.reciprocal %48 : vector<8x1xf32> -> vector<8x1xf32>
    %52 = vector.broadcast %51 : vector<8x1xf32> to vector<8x8xf32>
    %53 = arith.mulf %50, %52 : vector<8x8xf32>
    %c0_31 = arith.constant 0 : index
    %c16_32 = arith.constant 16 : index
    %54 = vector.load %arg12[%c0_31, %c16_32] : memref<8x32xf32, #tpu.memory_space<vmem>>, vector<8x8xf32>
    tpu.vector_store %arg12[%c0_31, %c16_32], %53 {strides = array<i32>} : memref<8x32xf32, #tpu.memory_space<vmem>>, vector<8x8xf32>,
    %55 = vector.extract_strided_slice %6 {offsets = [0, 24], sizes = [8, 8], strides = [1, 1]} : vector<8x32xf32> to vector<8x8xf32>
    %c24 = arith.constant 24 : index
    %c0_33 = arith.constant 0 : index
    %56 = vector.load %arg10[%c24, %c0_33] : memref<32x8xf32, #tpu.memory_space<vmem>>, vector<8x8xf32>
    %cst_34 = arith.constant dense<0.000000e+00> : vector<8x8xf32>
    %57 = tpu.matmul %55, %56, %cst_34 {dimension_numbers = #tpu.dot_dimension_numbers<[1], [0], [0], [1], [0, 0, 1, 1], [], []>} : vector<8x8xf32>, vector<8x8xf32>, vector<8x8xf32> -> vector<8x8xf32>
    %cst_35 = arith.constant dense<0xFF800000> : vector<8xf32>
    %58 = vector.multi_reduction <maximumf>, %57, %cst_35 [1] : vector<8x8xf32> to vector<8xf32>
    %59 = vector.shape_cast %58 : vector<8xf32> to vector<8x1xf32>
    %60 = vector.broadcast %59 : vector<8x1xf32> to vector<8x8xf32>
    %61 = arith.subf %57, %60 : vector<8x8xf32>
    %62 = math.exp %61 : vector<8x8xf32>
    %cst_36 = arith.constant dense<0.000000e+00> : vector<8xf32>
    %63 = vector.multi_reduction <add>, %62, %cst_36 [1] : vector<8x8xf32> to vector<8xf32>
    %64 = vector.shape_cast %63 : vector<8xf32> to vector<8x1xf32>
    %c0_37 = arith.constant 0 : index
    %c24_38 = arith.constant 24 : index
    %65 = vector.load %arg11[%c0_37, %c24_38] : memref<8x32xf32, #tpu.memory_space<vmem>>, vector<8x8xf32>
    %cst_39 = arith.constant dense<0.000000e+00> : vector<8x8xf32>
    %66 = tpu.matmul %62, %65, %cst_39 {dimension_numbers = #tpu.dot_dimension_numbers<[1], [0], [0], [1], [0, 0, 1, 1], [], []>} : vector<8x8xf32>, vector<8x8xf32>, vector<8x8xf32> -> vector<8x8xf32>
    %67 = tpu.reciprocal %64 : vector<8x1xf32> -> vector<8x1xf32>
    %68 = vector.broadcast %67 : vector<8x1xf32> to vector<8x8xf32>
    %69 = arith.mulf %66, %68 : vector<8x8xf32>
    %c0_40 = arith.constant 0 : index
    %c24_41 = arith.constant 24 : index
    %70 = vector.load %arg12[%c0_40, %c24_41] : memref<8x32xf32, #tpu.memory_space<vmem>>, vector<8x8xf32>
    tpu.vector_store %arg12[%c0_40, %c24_41], %69 {strides = array<i32>} : memref<8x32xf32, #tpu.memory_space<vmem>>, vector<8x8xf32>,
    %c0_42 = arith.constant 0 : index
    %c0_43 = arith.constant 0 : index
    %71 = vector.load %arg12[%c0_42, %c0_43] : memref<8x32xf32, #tpu.memory_space<vmem>>, vector<8x32xf32>
    %c0_44 = arith.constant 0 : index
    %c0_45 = arith.constant 0 : index
    %72 = vector.load %arg8[%c0_44, %c0_45] : memref<32x32xf32, #tpu.memory_space<vmem>>, vector<32x32xf32>
    %cst_46 = arith.constant dense<0.000000e+00> : vector<8x32xf32>
    %73 = tpu.matmul %71, %72, %cst_46 {dimension_numbers = #tpu.dot_dimension_numbers<[1], [0], [0], [1], [0, 0, 1, 1], [], []>} : vector<8x32xf32>, vector<32x32xf32>, vector<8x32xf32> -> vector<8x32xf32>
    %c0_47 = arith.constant 0 : index
    %c0_48 = arith.constant 0 : index
    %c0_49 = arith.constant 0 : index
    %74 = vector.load %arg9[%c0_47, %c0_48, %c0_49] : memref<1x8x32xf32, #tpu.memory_space<vmem>>, vector<1x8x32xf32>
    %75 = vector.shape_cast %74 : vector<1x8x32xf32> to vector<8x32xf32>
    %76 = vector.shape_cast %73 : vector<8x32xf32> to vector<1x8x32xf32>
    tpu.vector_store %arg9[%c0_47, %c0_48, %c0_49], %76 {strides = array<i32>} : memref<1x8x32xf32, #tpu.memory_space<vmem>>, vector<1x8x32xf32>,
    return
  }
  func.func @transform_0(%arg0: i32, %arg1: i32) -> (i32, i32, i32) {
    %c0_i32 = arith.constant 0 : i32
    %c0_i32_0 = arith.constant 0 : i32
    return %arg0, %arg1, %c0_i32 : i32, i32, i32
  }
  func.func @transform_1(%arg0: i32, %arg1: i32) -> (i32, i32, i32) {
    %c0_i32 = arith.constant 0 : i32
    %c0_i32_0 = arith.constant 0 : i32
    %c0_i32_1 = arith.constant 0 : i32
    return %arg0, %c0_i32, %c0_i32_0 : i32, i32, i32
  }
  func.func @transform_2(%arg0: i32, %arg1: i32) -> (i32, i32, i32) {
    %c0_i32 = arith.constant 0 : i32
    %c0_i32_0 = arith.constant 0 : i32
    %c0_i32_1 = arith.constant 0 : i32
    return %arg0, %c0_i32, %c0_i32_0 : i32, i32, i32
  }
  func.func @transform_3(%arg0: i32, %arg1: i32) -> (i32, i32) {
    %c0_i32 = arith.constant 0 : i32
    %c0_i32_0 = arith.constant 0 : i32
    %c0_i32_1 = arith.constant 0 : i32
    return %c0_i32, %c0_i32_0 : i32, i32
  }
  func.func @transform_4(%arg0: i32, %arg1: i32) -> (i32, i32) {
    %c0_i32 = arith.constant 0 : i32
    %c0_i32_0 = arith.constant 0 : i32
    %c0_i32_1 = arith.constant 0 : i32
    return %c0_i32, %c0_i32_0 : i32, i32
  }
  func.func @transform_5(%arg0: i32, %arg1: i32) -> (i32, i32) {
    %c0_i32 = arith.constant 0 : i32
    %c0_i32_0 = arith.constant 0 : i32
    %c0_i32_1 = arith.constant 0 : i32
    return %c0_i32, %c0_i32_0 : i32, i32
  }
  func.func @transform_6(%arg0: i32, %arg1: i32) -> (i32, i32) {
    %c0_i32 = arith.constant 0 : i32
    %c0_i32_0 = arith.constant 0 : i32
    %c0_i32_1 = arith.constant 0 : i32
    return %c0_i32, %c0_i32_0 : i32, i32
  }
  func.func @transform_7(%arg0: i32, %arg1: i32) -> (i32, i32, i32) {
    %c0_i32 = arith.constant 0 : i32
    %c0_i32_0 = arith.constant 0 : i32
    return %arg0, %arg1, %c0_i32 : i32, i32, i32
  }
}

</mosaic_0001>

<llo_original>
// kernel: tpu_custom_call.1
$region0: #{tpu_custom_call.1}
  #allocation0 [shape = 'u32[]', space=smem, size = 0x4, offset = 0x4, fixed_abs, tag = 'smem constant byte address 0x4 - core index']
  #allocation1 [shape = 'u32[144,128]{1,0:T(1,128)}', space=vmem, size = 0x12000, scoped, tag = 'internal scratch']
  #allocation2 [shape = 'f32[32,8]{1,0:T(8,128)}', space=vmem, size = 0x4000, scoped, tag = 'scratch operand']
  #allocation3 [shape = 'f32[8,32]{1,0:T(8,128)}', space=vmem, size = 0x1000, scoped, tag = 'scratch operand']
  #allocation4 [shape = 'f32[8,32]{1,0:T(8,128)}', space=vmem, size = 0x1000, scoped, tag = 'scratch operand']
  %s0 = inlined_call_operand.hbm [shape: f32[2,8,32], index: 0, kind: input, shape index: {}]
  %s1 = inlined_call_operand.hbm [shape: f32[2,8,32], index: 1, kind: input, shape index: {}]
  %s2 = inlined_call_operand.hbm [shape: f32[2,8,32], index: 2, kind: input, shape index: {}]
  %s3 = inlined_call_operand.hbm [shape: f32[32,32], index: 3, kind: input, shape index: {}]
  %s4 = inlined_call_operand.hbm [shape: f32[32,32], index: 4, kind: input, shape index: {}]
  %s5 = inlined_call_operand.hbm [shape: f32[32,32], index: 5, kind: input, shape index: {}]
  %s6 = inlined_call_operand.hbm [shape: f32[32,32], index: 6, kind: input, shape index: {}]
  %s7 = inlined_call_operand.hbm [shape: f32[2,8,32], index: 7, kind: output, shape index: {}]
  %s8 = sld [smem:[#allocation0]]
  $region93: #{tpu_custom_call.1} parent=0
    _
  %s10 = ssub.s32 1, %s8
  %s11 = scalar_select 0, %s10, %s8
  $region1: #{tpu_custom_call.1} parent=0
    #allocation5 [shape = 'u8[8192]{0}', space=vmem, size = 0x2000, scoped, tag = 'input window, operand 0']
    #allocation6 [shape = 's32[2]{0}', space=sflag, size = 0x8, scoped, tag = 'scoped memory for tpu_custom_call.1']
    #allocation7 [shape = 's32[2]{0}', space=sflag, size = 0x8, scoped, tag = 'scoped memory for tpu_custom_call.1']
    #allocation8 [shape = 'u8[8192]{0}', space=vmem, size = 0x2000, scoped, tag = 'input window, operand 1']
    #allocation9 [shape = 's32[2]{0}', space=sflag, size = 0x8, scoped, tag = 'scoped memory for tpu_custom_call.1']
    #allocation10 [shape = 'u8[8192]{0}', space=vmem, size = 0x2000, scoped, tag = 'input window, operand 2']
    #allocation11 [shape = 'u8[16384]{0}', space=vmem, size = 0x4000, scoped, tag = 'input window, operand 3, single buffered']
    #allocation12 [shape = 's32[1]{0}', space=sflag, size = 0x4, scoped, tag = 'scoped memory for tpu_custom_call.1']
    #allocation13 [shape = 'u8[16384]{0}', space=vmem, size = 0x4000, scoped, tag = 'input window, operand 4, single buffered']
    #allocation14 [shape = 'u8[16384]{0}', space=vmem, size = 0x4000, scoped, tag = 'input window, operand 5, single buffered']
    #allocation15 [shape = 's32[1]{0}', space=sflag, size = 0x4, scoped, tag = 'scoped memory for tpu_custom_call.1']
    #allocation16 [shape = 'u8[16384]{0}', space=vmem, size = 0x4000, scoped, tag = 'input window, operand 6, single buffered']
    #allocation17 [shape = 'u8[8192]{0}', space=vmem, size = 0x2000, scoped, tag = 'output window, operand 0']
    %12 = vsyncpa [#allocation6], 0
    %s13 = scalar_lea.sflag [#allocation6], 1
    %14 = vsyncpa %s13, 0
    %15 = vsyncpa [#allocation9], 0
    %s16 = scalar_lea.sflag [#allocation9], 1
    %17 = vsyncpa %s16, 0
    %18 = vsyncpa [#allocation12], 0
    %19 = vsyncpa [#allocation15], 0
    %20 = vsyncpa [#allocation7], 0
    %s21 = scalar_lea.sflag [#allocation7], 1
    %22 = vsyncpa %s21, 0
    loop: start=0, step=1, limit=4
    $region2: #{tpu_custom_call.1} parent=1 // loop_pre_header
      _
    $region3: #{tpu_custom_call.1} parent=1 // loop_header
      %s24 = sphi 0, %s28
      %p25 = scmp.ge.s32.totalorder %s24, 4
      %s31 = sphi 0, %s43
      %s32 = sphi 0, %s39
      %s33 = sphi 0, %s31
      %s34 = sphi 0, %s32
      %s35 = sphi 0, %s33
      %s36 = sphi 0, %s34
      %s48 = sphi 0, %s50
      %s51 = sphi 0, %s48
      %s52 = sphi 0, %s51
      %s68 = sphi 0, %s52
      %s74 = sphi 0, %s76
      %s77 = sphi 0, %s74
      %s78 = sphi 0, %s77
      %s94 = sphi 0, %s78
      %s100 = sphi 0, %s102
      %s103 = sphi 0, %s100
      %s104 = sphi 0, %s103
      %s120 = sphi 0, %s104
      %s124 = sphi 0, %s124
      %s126 = sphi 0, %s124
      %s127 = sphi 0, %s126
      %s141 = sphi 0, %s127
      %s145 = sphi 0, %s145
      %s147 = sphi 0, %s145
      %s148 = sphi 0, %s147
      %s162 = sphi 0, %s148
      %s166 = sphi 0, %s166
      %s168 = sphi 0, %s166
      %s169 = sphi 0, %s168
      %s183 = sphi 0, %s169
      %s187 = sphi 0, %s187
      %s189 = sphi 0, %s187
      %s190 = sphi 0, %s189
      %s204 = sphi 0, %s190
      %s212 = sphi 0, %s214
      %s215 = sphi 0, %s212
      %s216 = sphi 0, %s215
      %s232 = sphi 0, %s216
    $region4: #{tpu_custom_call.1} parent=1 // loop_header_branch
      %27 = sbr.rel (%p25) target = $region8
    $region5: #{tpu_custom_call.1} parent=1 // loop_body
      %s29 = ssub.s32 %s24, 1
      %s30 = ssub.s32 %s24, 2
      %s37 = sadd.s32 1, %s32
      %p38 = scmp.ge.s32.totalorder %s37, 1
      %s39 = scalar_select %p38, 0, %s37
      %s40 = sadd.s32 1, %s31
      %s41 = scalar_select %p38, %s40, %s31
      %p42 = scmp.ge.s32.totalorder %s41, 2
      %s43 = scalar_select %p42, 0, %s41
      %s44 = ssub.s32 %s31, %s43
      %s45 = ssub.s32 %s32, %s39
      %s46 = sor.u32 %s44, %s45
      %p47 = scmp.eq.s32.totalorder %s46, 0
      %s49 = sadd.s32 %s48, 1
      %s50 = scalar_select %p47, %s48, %s49
      %p53 = pneg %p47
      %p54 = scmp.eq.s32.totalorder %s24, 1
      %p55 = por %p53, %p54
      %p56 = scmp.ne.s32.totalorder %s48, %s51
      %p57 = scmp.eq.s32.totalorder %s24, 0
      %p58 = por %p56, %p57
      %p59 = scmp.ne.s32.totalorder %s48, %s51
      %p60 = scmp.eq.s32.totalorder %s29, 1
      %p61 = por %p59, %p60
      %p62 = scmp.ne.s32.totalorder %s51, %s52
      %p63 = scmp.eq.s32.totalorder %s29, 0
      %p64 = por %p62, %p63
      %p65 = scmp.ne.s32.totalorder %s51, %s52
      %p66 = scmp.eq.s32.totalorder %s30, 1
      %p67 = por %p65, %p66
      %p69 = scmp.ne.s32.totalorder %s52, %s68
      %p70 = scmp.eq.s32.totalorder %s30, 0
      %p71 = por %p69, %p70
      %s72 = ssub.s32 %s31, %s43
      %p73 = scmp.eq.s32.totalorder %s72, 0
      %s75 = sadd.s32 %s74, 1
      %s76 = scalar_select %p73, %s74, %s75
      %p79 = pneg %p73
      %p80 = scmp.eq.s32.totalorder %s24, 1
      %p81 = por %p79, %p80
      %p82 = scmp.ne.s32.totalorder %s74, %s77
      %p83 = scmp.eq.s32.totalorder %s24, 0
      %p84 = por %p82, %p83
      %p85 = scmp.ne.s32.totalorder %s74, %s77
      %p86 = scmp.eq.s32.totalorder %s29, 1
      %p87 = por %p85, %p86
      %p88 = scmp.ne.s32.totalorder %s77, %s78
      %p89 = scmp.eq.s32.totalorder %s29, 0
      %p90 = por %p88, %p89
      %p91 = scmp.ne.s32.totalorder %s77, %s78
      %p92 = scmp.eq.s32.totalorder %s30, 1
      %p93 = por %p91, %p92
      %p95 = scmp.ne.s32.totalorder %s78, %s94
      %p96 = scmp.eq.s32.totalorder %s30, 0
      %p97 = por %p95, %p96
      %s98 = ssub.s32 %s31, %s43
      %p99 = scmp.eq.s32.totalorder %s98, 0
      %s101 = sadd.s32 %s100, 1
      %s102 = scalar_select %p99, %s100, %s101
      %p105 = pneg %p99
      %p106 = scmp.eq.s32.totalorder %s24, 1
      %p107 = por %p105, %p106
      %p108 = scmp.ne.s32.totalorder %s100, %s103
      %p109 = scmp.eq.s32.totalorder %s24, 0
      %p110 = por %p108, %p109
      %p111 = scmp.ne.s32.totalorder %s100, %s103
      %p112 = scmp.eq.s32.totalorder %s29, 1
      %p113 = por %p111, %p112
      %p114 = scmp.ne.s32.totalorder %s103, %s104
      %p115 = scmp.eq.s32.totalorder %s29, 0
      %p116 = por %p114, %p115
      %p117 = scmp.ne.s32.totalorder %s103, %s104
      %p118 = scmp.eq.s32.totalorder %s30, 1
      %p119 = por %p117, %p118
      %p121 = scmp.ne.s32.totalorder %s104, %s120
      %p122 = scmp.eq.s32.totalorder %s30, 0
      %p123 = por %p121, %p122
      %s125 = sadd.s32 %s124, 1
      %p128 = scmp.eq.s32.totalorder %s24, 1
      %p129 = scmp.ne.s32.totalorder %s124, %s126
      %p130 = scmp.eq.s32.totalorder %s24, 0
      %p131 = por %p129, %p130
      %p132 = scmp.ne.s32.totalorder %s124, %s126
      %p133 = scmp.eq.s32.totalorder %s29, 1
      %p134 = por %p132, %p133
      %p135 = scmp.ne.s32.totalorder %s126, %s127
      %p136 = scmp.eq.s32.totalorder %s29, 0
      %p137 = por %p135, %p136
      %p138 = scmp.ne.s32.totalorder %s126, %s127
      %p139 = scmp.eq.s32.totalorder %s30, 1
      %p140 = por %p138, %p139
      %p142 = scmp.ne.s32.totalorder %s127, %s141
      %p143 = scmp.eq.s32.totalorder %s30, 0
      %p144 = por %p142, %p143
      %s146 = sadd.s32 %s145, 1
      %p149 = scmp.eq.s32.totalorder %s24, 1
      %p150 = scmp.ne.s32.totalorder %s145, %s147
      %p151 = scmp.eq.s32.totalorder %s24, 0
      %p152 = por %p150, %p151
      %p153 = scmp.ne.s32.totalorder %s145, %s147
      %p154 = scmp.eq.s32.totalorder %s29, 1
      %p155 = por %p153, %p154
      %p156 = scmp.ne.s32.totalorder %s147, %s148
      %p157 = scmp.eq.s32.totalorder %s29, 0
      %p158 = por %p156, %p157
      %p159 = scmp.ne.s32.totalorder %s147, %s148
      %p160 = scmp.eq.s32.totalorder %s30, 1
      %p161 = por %p159, %p160
      %p163 = scmp.ne.s32.totalorder %s148, %s162
      %p164 = scmp.eq.s32.totalorder %s30, 0
      %p165 = por %p163, %p164
      %s167 = sadd.s32 %s166, 1
      %p170 = scmp.eq.s32.totalorder %s24, 1
      %p171 = scmp.ne.s32.totalorder %s166, %s168
      %p172 = scmp.eq.s32.totalorder %s24, 0
      %p173 = por %p171, %p172
      %p174 = scmp.ne.s32.totalorder %s166, %s168
      %p175 = scmp.eq.s32.totalorder %s29, 1
      %p176 = por %p174, %p175
      %p177 = scmp.ne.s32.totalorder %s168, %s169
      %p178 = scmp.eq.s32.totalorder %s29, 0
      %p179 = por %p177, %p178
      %p180 = scmp.ne.s32.totalorder %s168, %s169
      %p181 = scmp.eq.s32.totalorder %s30, 1
      %p182 = por %p180, %p181
      %p184 = scmp.ne.s32.totalorder %s169, %s183
      %p185 = scmp.eq.s32.totalorder %s30, 0
      %p186 = por %p184, %p185
      %s188 = sadd.s32 %s187, 1
      %p191 = scmp.eq.s32.totalorder %s24, 1
      %p192 = scmp.ne.s32.totalorder %s187, %s189
      %p193 = scmp.eq.s32.totalorder %s24, 0
      %p194 = por %p192, %p193
      %p195 = scmp.ne.s32.totalorder %s187, %s189
      %p196 = scmp.eq.s32.totalorder %s29, 1
      %p197 = por %p195, %p196
      %p198 = scmp.ne.s32.totalorder %s189, %s190
      %p199 = scmp.eq.s32.totalorder %s29, 0
      %p200 = por %p198, %p199
      %p201 = scmp.ne.s32.totalorder %s189, %s190
      %p202 = scmp.eq.s32.totalorder %s30, 1
      %p203 = por %p201, %p202
      %p205 = scmp.ne.s32.totalorder %s190, %s204
      %p206 = scmp.eq.s32.totalorder %s30, 0
      %p207 = por %p205, %p206
      %s208 = ssub.s32 %s31, %s43
      %s209 = ssub.s32 %s32, %s39
      %s210 = sor.u32 %s208, %s209
      %p211 = scmp.eq.s32.totalorder %s210, 0
      %s213 = sadd.s32 %s212, 1
      %s214 = scalar_select %p211, %s212, %s213
      %p217 = pneg %p211
      %p218 = scmp.eq.s32.totalorder %s24, 1
      %p219 = por %p217, %p218
      %p220 = scmp.ne.s32.totalorder %s212, %s215
      %p221 = scmp.eq.s32.totalorder %s24, 0
      %p222 = por %p220, %p221
      %p223 = scmp.ne.s32.totalorder %s212, %s215
      %p224 = scmp.eq.s32.totalorder %s29, 1
      %p225 = por %p223, %p224
      %p226 = scmp.ne.s32.totalorder %s215, %s216
      %p227 = scmp.eq.s32.totalorder %s29, 0
      %p228 = por %p226, %p227
      %p229 = scmp.ne.s32.totalorder %s215, %s216
      %p230 = scmp.eq.s32.totalorder %s30, 1
      %p231 = por %p229, %p230
      %p233 = scmp.ne.s32.totalorder %s216, %s232
      %p234 = scmp.eq.s32.totalorder %s30, 0
      %p235 = por %p233, %p234
      %p236 = scmp.le.s32.totalorder 1, %s24
      %p237 = scmp.lt.s32.totalorder %s24, 3
      %p238 = pnand %p236, %p237
      %p239 = pneg %p238
      // Predicated region
      $region9: #{tpu_custom_call.1} parent=5 // pred_check
        _
      $region10: #{tpu_custom_call.1} parent=5 // pred_check_branch
        %241 = sbr.rel (%p238) target = $region12
      $region11: #{tpu_custom_call.1} parent=5 // pred_region
        %s242 = ssub.s32 %s24, 1
        // Predicated region
        $region13: #{tpu_custom_call.1} parent=11 // pred_check
          %p243 = pneg %p137
        $region14: #{tpu_custom_call.1} parent=11 // pred_check_branch
          %245 = sbr.rel (%p243) target = $region16
        $region15: #{tpu_custom_call.1} parent=11 // pred_region
          %s247 = ssub.s32 512, 512
          %248 = vsyncadd [#allocation12], %s247
          %s249 = sshll.u32 [#allocation11], 4
          %s250 = int_to_ptr.vmem [resolvable:$true] %s249
          %255 = dma.hbm_to_vmem [thread:$0]  %s3, 512, %s250, [#allocation12], 128, 128, 8
        $region16: #{tpu_custom_call.1} parent=11 // pred_fallthru
          _
        // Predicated region
        $region17: #{tpu_custom_call.1} parent=11 // pred_check
          %p256 = pneg %p158
        $region18: #{tpu_custom_call.1} parent=11 // pred_check_branch
          %258 = sbr.rel (%p256) target = $region20
        $region19: #{tpu_custom_call.1} parent=11 // pred_region
          %s260 = ssub.s32 512, 512
          %261 = vsyncadd [#allocation12], %s260
          %s262 = sshll.u32 [#allocation13], 4
          %s263 = int_to_ptr.vmem [resolvable:$true] %s262
          %268 = dma.hbm_to_vmem [thread:$0]  %s4, 512, %s263, [#allocation12], 128, 128, 8
        $region20: #{tpu_custom_call.1} parent=11 // pred_fallthru
          _
        // Predicated region
        $region21: #{tpu_custom_call.1} parent=11 // pred_check
          %p269 = pneg %p179
        $region22: #{tpu_custom_call.1} parent=11 // pred_check_branch
          %271 = sbr.rel (%p269) target = $region24
        $region23: #{tpu_custom_call.1} parent=11 // pred_region
          %s273 = ssub.s32 512, 512
          %274 = vsyncadd [#allocation15], %s273
          %s275 = sshll.u32 [#allocation14], 4
          %s276 = int_to_ptr.vmem [resolvable:$true] %s275
          %281 = dma.hbm_to_vmem [thread:$0]  %s5, 512, %s276, [#allocation15], 128, 128, 8
        $region24: #{tpu_custom_call.1} parent=11 // pred_fallthru
          _
        // Predicated region
        $region25: #{tpu_custom_call.1} parent=11 // pred_check
          %p282 = pneg %p200
        $region26: #{tpu_custom_call.1} parent=11 // pred_check_branch
          %284 = sbr.rel (%p282) target = $region28
        $region27: #{tpu_custom_call.1} parent=11 // pred_region
          %s286 = ssub.s32 512, 512
          %287 = vsyncadd [#allocation15], %s286
          %s288 = sshll.u32 [#allocation16], 4
          %s289 = int_to_ptr.vmem [resolvable:$true] %s288
          %294 = dma.hbm_to_vmem [thread:$0]  %s6, 512, %s289, [#allocation15], 128, 128, 8
        $region28: #{tpu_custom_call.1} parent=11 // pred_fallthru
          _
      $region12: #{tpu_custom_call.1} parent=5 // pred_fallthru
        _
      %p295 = scmp.lt.s32.totalorder %s24, 2
      // Predicated region
      $region29: #{tpu_custom_call.1} parent=5 // pred_check
        %p296 = pneg %p295
      $region30: #{tpu_custom_call.1} parent=5 // pred_check_branch
        %298 = sbr.rel (%p296) target = $region32
      $region31: #{tpu_custom_call.1} parent=5 // pred_region
        // Predicated region
        $region33: #{tpu_custom_call.1} parent=31 // pred_check
          %p299 = pneg %p58
        $region34: #{tpu_custom_call.1} parent=31 // pred_check_branch
          %301 = sbr.rel (%p299) target = $region36
        $region35: #{tpu_custom_call.1} parent=31 // pred_region
          %s302 = sand.u32 %s48, 1
          %s303 = scalar_lea.sflag [#allocation6], %s302
          %s304 = sand.u32 %s48, 1
          %s305 = smul.addr %s304, 8
          %s306 = scalar_lea.vmem [#allocation5], %s305
          %s308 = ssub.s32 128, 128
          %309 = vsyncadd %s303, %s308
          %s310 = sadd.s32 %s32, %s31
          %s311 = smul.addr %s310, 128
          %s312 = scalar_lea.hbm %s0, %s311
          %s314 = sshll.u32 %s306, 4
          %s315 = int_to_ptr.vmem [resolvable:$true] %s314
          %317 = dma.hbm_to_vmem [thread:$0]  %s312, 128, %s315, %s303
        $region36: #{tpu_custom_call.1} parent=31 // pred_fallthru
          _
        // Predicated region
        $region37: #{tpu_custom_call.1} parent=31 // pred_check
          %p318 = pneg %p84
        $region38: #{tpu_custom_call.1} parent=31 // pred_check_branch
          %320 = sbr.rel (%p318) target = $region40
        $region39: #{tpu_custom_call.1} parent=31 // pred_region
          %s321 = sand.u32 %s24, 1
          %s322 = scalar_lea.sflag [#allocation9], %s321
          %s323 = sand.u32 %s74, 1
          %s324 = smul.addr %s323, 8
          %s325 = scalar_lea.vmem [#allocation8], %s324
          %s327 = ssub.s32 128, 128
          %328 = vsyncadd %s322, %s327
          %s329 = smul.addr %s31, 128
          %s330 = scalar_lea.hbm %s1, %s329
          %s332 = sshll.u32 %s325, 4
          %s333 = int_to_ptr.vmem [resolvable:$true] %s332
          %335 = dma.hbm_to_vmem [thread:$0]  %s330, 128, %s333, %s322
        $region40: #{tpu_custom_call.1} parent=31 // pred_fallthru
          _
        // Predicated region
        $region41: #{tpu_custom_call.1} parent=31 // pred_check
          %p336 = pneg %p110
        $region42: #{tpu_custom_call.1} parent=31 // pred_check_branch
          %338 = sbr.rel (%p336) target = $region44
        $region43: #{tpu_custom_call.1} parent=31 // pred_region
          %s339 = sand.u32 %s24, 1
          %s340 = scalar_lea.sflag [#allocation9], %s339
          %s341 = sand.u32 %s100, 1
          %s342 = smul.addr %s341, 8
          %s343 = scalar_lea.vmem [#allocation10], %s342
          %s345 = ssub.s32 128, 128
          %346 = vsyncadd %s340, %s345
          %s347 = smul.addr %s31, 128
          %s348 = scalar_lea.hbm %s2, %s347
          %s350 = sshll.u32 %s343, 4
          %s351 = int_to_ptr.vmem [resolvable:$true] %s350
          %353 = dma.hbm_to_vmem [thread:$0]  %s348, 128, %s351, %s340
        $region44: #{tpu_custom_call.1} parent=31 // pred_fallthru
          _
      $region32: #{tpu_custom_call.1} parent=5 // pred_fallthru
        _
      %p354 = scmp.le.s32.totalorder 1, %s24
      %p355 = scmp.lt.s32.totalorder %s24, 3
      %p356 = pnand %p354, %p355
      %p357 = pneg %p356
      // Predicated region
      $region45: #{tpu_custom_call.1} parent=5 // pred_check
        _
      $region46: #{tpu_custom_call.1} parent=5 // pred_check_branch
        %359 = sbr.rel (%p356) target = $region48
      $region47: #{tpu_custom_call.1} parent=5 // pred_region
        %s360 = ssub.s32 %s24, 1
        %s361 = sand.u32 %s51, 1
        %s362 = scalar_lea.sflag [#allocation6], %s361
        %s363 = sand.u32 %s51, 1
        %s364 = smul.addr %s363, 8
        %s365 = scalar_lea.vmem [#allocation5], %s364
        // Predicated region
        $region49: #{tpu_custom_call.1} parent=47 // pred_check
          %p366 = pneg %p64
        $region50: #{tpu_custom_call.1} parent=47 // pred_check_branch
          %368 = sbr.rel (%p366) target = $region52
        $region51: #{tpu_custom_call.1} parent=47 // pred_region
          %369 = dma.done %s362, 128
        $region52: #{tpu_custom_call.1} parent=47 // pred_fallthru
          _
        %s370 = sand.u32 %s29, 1
        %s371 = scalar_lea.sflag [#allocation9], %s370
        %s372 = sand.u32 %s77, 1
        %s373 = smul.addr %s372, 8
        %s374 = scalar_lea.vmem [#allocation8], %s373
        // Predicated region
        $region53: #{tpu_custom_call.1} parent=47 // pred_check
          %p375 = pneg %p90
        $region54: #{tpu_custom_call.1} parent=47 // pred_check_branch
          %377 = sbr.rel (%p375) target = $region56
        $region55: #{tpu_custom_call.1} parent=47 // pred_region
          %378 = dma.done %s371, 128
        $region56: #{tpu_custom_call.1} parent=47 // pred_fallthru
          _
        %s379 = sand.u32 %s29, 1
        %s380 = scalar_lea.sflag [#allocation9], %s379
        %s381 = sand.u32 %s103, 1
        %s382 = smul.addr %s381, 8
        %s383 = scalar_lea.vmem [#allocation10], %s382
        // Predicated region
        $region57: #{tpu_custom_call.1} parent=47 // pred_check
          %p384 = pneg %p116
        $region58: #{tpu_custom_call.1} parent=47 // pred_check_branch
          %386 = sbr.rel (%p384) target = $region60
        $region59: #{tpu_custom_call.1} parent=47 // pred_region
          %387 = dma.done %s380, 128
        $region60: #{tpu_custom_call.1} parent=47 // pred_fallthru
          _
        // Predicated region
        $region61: #{tpu_custom_call.1} parent=47 // pred_check
          %p388 = pneg %p137
        $region62: #{tpu_custom_call.1} parent=47 // pred_check_branch
          %390 = sbr.rel (%p388) target = $region64
        $region63: #{tpu_custom_call.1} parent=47 // pred_region
          %391 = dma.done [#allocation12], 512
        $region64: #{tpu_custom_call.1} parent=47 // pred_fallthru
          _
        // Predicated region
        $region65: #{tpu_custom_call.1} parent=47 // pred_check
          %p392 = pneg %p158
        $region66: #{tpu_custom_call.1} parent=47 // pred_check_branch
          %394 = sbr.rel (%p392) target = $region68
        $region67: #{tpu_custom_call.1} parent=47 // pred_region
          %395 = dma.done [#allocation12], 512
        $region68: #{tpu_custom_call.1} parent=47 // pred_fallthru
          _
        // Predicated region
        $region69: #{tpu_custom_call.1} parent=47 // pred_check
          %p396 = pneg %p179
        $region70: #{tpu_custom_call.1} parent=47 // pred_check_branch
          %398 = sbr.rel (%p396) target = $region72
        $region71: #{tpu_custom_call.1} parent=47 // pred_region
          %399 = dma.done [#allocation15], 512
        $region72: #{tpu_custom_call.1} parent=47 // pred_fallthru
          _
        // Predicated region
        $region73: #{tpu_custom_call.1} parent=47 // pred_check
          %p400 = pneg %p200
        $region74: #{tpu_custom_call.1} parent=47 // pred_check_branch
          %402 = sbr.rel (%p400) target = $region76
        $region75: #{tpu_custom_call.1} parent=47 // pred_region
          %403 = dma.done [#allocation15], 512
        $region76: #{tpu_custom_call.1} parent=47 // pred_fallthru
          _
        %s404 = sand.u32 %s51, 1
        %s405 = scalar_lea.sflag [#allocation6], %s404
        %s406 = sand.u32 %s51, 1
        %s407 = smul.addr %s406, 8
        %s408 = scalar_lea.vmem [#allocation5], %s407
        %p409 = pneg %p64
        %p410 = pneg %p61
        %s411 = sand.u32 %s29, 1
        %s412 = scalar_lea.sflag [#allocation9], %s411
        %s413 = sand.u32 %s77, 1
        %s414 = smul.addr %s413, 8
        %s415 = scalar_lea.vmem [#allocation8], %s414
        %p416 = pneg %p90
        %p417 = pneg %p87
        %s418 = sand.u32 %s29, 1
        %s419 = scalar_lea.sflag [#allocation9], %s418
        %s420 = sand.u32 %s103, 1
        %s421 = smul.addr %s420, 8
        %s422 = scalar_lea.vmem [#allocation10], %s421
        %p423 = pneg %p116
        %p424 = pneg %p113
        %p425 = pneg %p137
        %p426 = pneg %p134
        %p427 = pneg %p158
        %p428 = pneg %p155
        %p429 = pneg %p179
        %p430 = pneg %p176
        %p431 = pneg %p200
        %p432 = pneg %p197
        %p433 = pneg %p228
        %p434 = pneg %p225
        %s435 = sand.u32 %s215, 1
        %s436 = scalar_lea.sflag [#allocation7], %s435
        %s437 = sand.u32 %s215, 1
        %s438 = smul.addr %s437, 8
        %s439 = scalar_lea.vmem [#allocation17], %s438
        %p440 = scmp.eq.s32.totalorder %s34, 0
        // Predicated region
        $region77: #{tpu_custom_call.1} parent=47 // pred_check
          %p441 = pneg %p440
        $region78: #{tpu_custom_call.1} parent=47 // pred_check_branch
          %443 = sbr.rel (%p441) target = $region80
        $region79: #{tpu_custom_call.1} parent=47 // pred_region
          %v444 = vld [vmem:[%s374] sm:$0xff]
          %v445 = vld [vmem:[%s383] sm:$0xff]
          %v446 = vld [vmem:[#allocation13] sm:$0xff]
          %v447 = vld [vmem:[#allocation13 + $0x8] sm:$0xff]
          %v448 = vld [vmem:[#allocation13 + $0x10] sm:$0xff]
          %v449 = vld [vmem:[#allocation13 + $0x18] sm:$0xff]
          %vm450 = vcmask 261120
          %v452 = vsel %vm450, %v446, 0
          %v455 = vsel %vm450, %v447, 0
          %v458 = vsel %vm450, %v448, 0
          %v461 = vsel %vm450, %v449, 0
          %v464 = vsel %vm450, %v444, 0
          %466 = vmatprep.subr.mxu0 0.0
          %467 = vmatpush1.xpose.msra.mxu0 %v464
          %468 = vmatprep.subr.mxu0 0.0
          %469 = vmatpush1.xpose.msra.mxu0 0.0
          %470 = vmatprep.subr.mxu0 0.0
          %471 = vmatpush1.xpose.msra.mxu0 0.0
          %472 = vmatprep.subr.mxu0 0.0
          %473 = vmatpush1.xpose.msra.mxu0 0.0
          %474 = vmatprep.subr.mxu0 0.0
          %475 = vmatpush1.xpose.msra.mxu0 0.0
          %476 = vmatprep.subr.mxu0 0.0
          %477 = vmatpush1.xpose.msra.mxu0 0.0
          %478 = vmatprep.subr.mxu0 0.0
          %479 = vmatpush1.xpose.msra.mxu0 0.0
          %480 = vmatprep.subr.mxu0 0.0
          %481 = vmatpush1.xpose.msra.mxu0 0.0
          %482 = vmatprep.subr.mxu0 0.0
          %483 = vmatpush1.xpose.msra.mxu0 0.0
          %484 = vmatprep.subr.mxu0 0.0
          %485 = vmatpush1.xpose.msra.mxu0 0.0
          %486 = vmatprep.subr.mxu0 0.0
          %487 = vmatpush1.xpose.msra.mxu0 0.0
          %488 = vmatprep.subr.mxu0 0.0
          %489 = vmatpush1.xpose.msra.mxu0 0.0
          %490 = vmatprep.subr.mxu0 0.0
          %491 = vmatpush1.xpose.msra.mxu0 0.0
          %492 = vmatprep.subr.mxu0 0.0
          %493 = vmatpush1.xpose.msra.mxu0 0.0
          %494 = vmatprep.subr.mxu0 0.0
          %495 = vmatpush1.xpose.msra.mxu0 0.0
          %496 = vmatprep.subr.mxu0 0.0
          %497 = vmatpush1.xpose.msra.mxu0 0.0
          %498 = vmatprep.subr.mxu0 0.0
          %499 = vmatpush1.xpose.msra.mxu0 0.0
          %500 = vmatprep.subr.mxu0 0.0
          %501 = vmatpush1.xpose.msra.mxu0 0.0
          %502 = vmatprep.subr.mxu0 0.0
          %503 = vmatpush1.xpose.msra.mxu0 0.0
          %504 = vmatprep.subr.mxu0 0.0
          %505 = vmatpush1.xpose.msra.mxu0 0.0
          %506 = vmatprep.subr.mxu0 0.0
          %507 = vmatpush1.xpose.msra.mxu0 0.0
          %508 = vmatprep.subr.mxu0 0.0
          %509 = vmatpush1.xpose.msra.mxu0 0.0
          %510 = vmatprep.subr.mxu0 0.0
          %511 = vmatpush1.xpose.msra.mxu0 0.0
          %512 = vmatprep.subr.mxu0 0.0
          %513 = vmatpush1.xpose.msra.mxu0 0.0
          %514 = vmatprep.subr.mxu0 0.0
          %515 = vmatpush1.xpose.msra.mxu0 0.0
          %516 = vmatprep.subr.mxu0 0.0
          %517 = vmatpush1.xpose.msra.mxu0 0.0
          %518 = vmatprep.subr.mxu0 0.0
          %519 = vmatpush1.xpose.msra.mxu0 0.0
          %520 = vmatprep.subr.mxu0 0.0
          %521 = vmatpush1.xpose.msra.mxu0 0.0
          %522 = vmatprep.subr.mxu0 0.0
          %523 = vmatpush1.xpose.msra.mxu0 0.0
          %524 = vmatprep.subr.mxu0 0.0
          %525 = vmatpush1.xpose.msra.mxu0 0.0
          %526 = vmatprep.subr.mxu0 0.0
          %527 = vmatpush1.xpose.msra.mxu0 0.0
          %528 = vmatprep.subr.mxu0 0.0
          %529 = vmatpush1.xpose.msra.mxu0 0.0
          %530 = vmatprep.mubr.f32.mxu0 0.0
          %531 = vmatmul.mubr.f32.gmra.mrb[0].mxu0 %v452
          %v532 = vpop.f32.mrb[0].mxu0
          %v533 = vadd.f32 0.0, %v532
          %v534 = vpop.f32.mrb[0].mxu0
          %535 = vmatprep.mubr.f32.mxu0 0.0
          %536 = vmatmul.mubr.f32.gmra.mrb[0].mxu0 %v455
          %v537 = vpop.f32.mrb[0].mxu0
          %v538 = vadd.f32 0.0, %v537
          %v539 = vpop.f32.mrb[0].mxu0
          %540 = vmatprep.mubr.f32.mxu0 0.0
          %541 = vmatmul.mubr.f32.gmra.mrb[0].mxu0 %v458
          %v542 = vpop.f32.mrb[0].mxu0
          %v543 = vadd.f32 0.0, %v542
          %v544 = vpop.f32.mrb[0].mxu0
          %545 = vmatprep.mubr.f32.mxu0 0.0
          %546 = vmatmul.mubr.f32.gmra.mrb[0].mxu0 %v461
          %v547 = vpop.f32.mrb[0].mxu0
          %v548 = vadd.f32 0.0, %v547
          %v549 = vpop.f32.mrb[0].mxu0
          %550 = vdwg.mxu0
          %v551 = vld [vmem:[#allocation14] sm:$0xff]
          %v552 = vld [vmem:[#allocation14 + $0x8] sm:$0xff]
          %v553 = vld [vmem:[#allocation14 + $0x10] sm:$0xff]
          %v554 = vld [vmem:[#allocation14 + $0x18] sm:$0xff]
          %v556 = vsel %vm450, %v445, 0
          %558 = vmatprep.subr.mxu0 0.0
          %559 = vmatpush1.msra.mxu0 %v551
          %560 = vmatprep.subr.mxu0 0.0
          %561 = vmatpush1.msra.mxu0 %v552
          %562 = vmatprep.subr.mxu0 0.0
          %563 = vmatpush1.msra.mxu0 %v553
          %564 = vmatprep.subr.mxu0 0.0
          %565 = vmatpush1.msra.mxu0 %v554
          %566 = vmatprep.subr.mxu0 0.0
          %567 = vmatpush1.msra.mxu0 0.0
          %568 = vmatprep.subr.mxu0 0.0
          %569 = vmatpush1.msra.mxu0 0.0
          %570 = vmatprep.subr.mxu0 0.0
          %571 = vmatpush1.msra.mxu0 0.0
          %572 = vmatprep.subr.mxu0 0.0
          %573 = vmatpush1.msra.mxu0 0.0
          %574 = vmatprep.subr.mxu0 0.0
          %575 = vmatpush1.msra.mxu0 0.0
          %576 = vmatprep.subr.mxu0 0.0
          %577 = vmatpush1.msra.mxu0 0.0
          %578 = vmatprep.subr.mxu0 0.0
          %579 = vmatpush1.msra.mxu0 0.0
          %580 = vmatprep.subr.mxu0 0.0
          %581 = vmatpush1.msra.mxu0 0.0
          %582 = vmatprep.subr.mxu0 0.0
          %583 = vmatpush1.msra.mxu0 0.0
          %584 = vmatprep.subr.mxu0 0.0
          %585 = vmatpush1.msra.mxu0 0.0
          %586 = vmatprep.subr.mxu0 0.0
          %587 = vmatpush1.msra.mxu0 0.0
          %588 = vmatprep.subr.mxu0 0.0
          %589 = vmatpush1.msra.mxu0 0.0
          %590 = vmatprep.subr.mxu0 0.0
          %591 = vmatpush1.msra.mxu0 0.0
          %592 = vmatprep.subr.mxu0 0.0
          %593 = vmatpush1.msra.mxu0 0.0
          %594 = vmatprep.subr.mxu0 0.0
          %595 = vmatpush1.msra.mxu0 0.0
          %596 = vmatprep.subr.mxu0 0.0
          %597 = vmatpush1.msra.mxu0 0.0
          %598 = vmatprep.subr.mxu0 0.0
          %599 = vmatpush1.msra.mxu0 0.0
          %600 = vmatprep.subr.mxu0 0.0
          %601 = vmatpush1.msra.mxu0 0.0
          %602 = vmatprep.subr.mxu0 0.0
          %603 = vmatpush1.msra.mxu0 0.0
          %604 = vmatprep.subr.mxu0 0.0
          %605 = vmatpush1.msra.mxu0 0.0
          %606 = vmatprep.subr.mxu0 0.0
          %607 = vmatpush1.msra.mxu0 0.0
          %608 = vmatprep.subr.mxu0 0.0
          %609 = vmatpush1.msra.mxu0 0.0
          %610 = vmatprep.subr.mxu0 0.0
          %611 = vmatpush1.msra.mxu0 0.0
          %612 = vmatprep.subr.mxu0 0.0
          %613 = vmatpush1.msra.mxu0 0.0
          %614 = vmatprep.subr.mxu0 0.0
          %615 = vmatpush1.msra.mxu0 0.0
          %616 = vmatprep.subr.mxu0 0.0
          %617 = vmatpush1.msra.mxu0 0.0
          %618 = vmatprep.subr.mxu0 0.0
          %619 = vmatpush1.msra.mxu0 0.0
          %620 = vmatprep.subr.mxu0 0.0
          %621 = vmatpush1.msra.mxu0 0.0
          %622 = vmatprep.mubr.f32.mxu0 0.0
          %623 = vmatmul.mubr.f32.gmra.mrb[0].mxu0 %v556
          %v624 = vpop.f32.mrb[0].mxu0
          %v625 = vadd.f32 0.0, %v624
          %v626 = vpop.f32.mrb[0].mxu0
          %627 = vdwg.mxu0
          %vm628 = vcmask 64512
          %629 = vst.msk [vmem:[#allocation2] sm:$0xff] %vm628, %v533
          %630 = vst.msk [vmem:[#allocation2 + $0x8] sm:$0xff] %vm628, %v538
          %631 = vst.msk [vmem:[#allocation2 + $0x10] sm:$0xff] %vm628, %v543
          %632 = vst.msk [vmem:[#allocation2 + $0x18] sm:$0xff] %vm628, %v548
          %633 = vst.msk [vmem:[#allocation3] sm:$0xff] %vm450, %v625
        $region80: #{tpu_custom_call.1} parent=47 // pred_fallthru
          _
        %v634 = vld [vmem:[%s365] sm:$0xff]
        %v635 = vld [vmem:[#allocation11] sm:$0xff]
        %v636 = vld [vmem:[#allocation11 + $0x8] sm:$0xff]
        %v637 = vld [vmem:[#allocation11 + $0x10] sm:$0xff]
        %v638 = vld [vmem:[#allocation11 + $0x18] sm:$0xff]
        %vm639 = vcmask 261120
        %v641 = vsel %vm639, %v634, 0
        %643 = vmatprep.subr.mxu0 0.0
        %644 = vmatpush1.msra.mxu0 %v635
        %645 = vmatprep.subr.mxu0 0.0
        %646 = vmatpush1.msra.mxu0 %v636
        %647 = vmatprep.subr.mxu0 0.0
        %648 = vmatpush1.msra.mxu0 %v637
        %649 = vmatprep.subr.mxu0 0.0
        %650 = vmatpush1.msra.mxu0 %v638
        %651 = vmatprep.subr.mxu0 0.0
        %652 = vmatpush1.msra.mxu0 0.0
        %653 = vmatprep.subr.mxu0 0.0
        %654 = vmatpush1.msra.mxu0 0.0
        %655 = vmatprep.subr.mxu0 0.0
        %656 = vmatpush1.msra.mxu0 0.0
        %657 = vmatprep.subr.mxu0 0.0
        %658 = vmatpush1.msra.mxu0 0.0
        %659 = vmatprep.subr.mxu0 0.0
        %660 = vmatpush1.msra.mxu0 0.0
        %661 = vmatprep.subr.mxu0 0.0
        %662 = vmatpush1.msra.mxu0 0.0
        %663 = vmatprep.subr.mxu0 0.0
        %664 = vmatpush1.msra.mxu0 0.0
        %665 = vmatprep.subr.mxu0 0.0
        %666 = vmatpush1.msra.mxu0 0.0
        %667 = vmatprep.subr.mxu0 0.0
        %668 = vmatpush1.msra.mxu0 0.0
        %669 = vmatprep.subr.mxu0 0.0
        %670 = vmatpush1.msra.mxu0 0.0
        %671 = vmatprep.subr.mxu0 0.0
        %672 = vmatpush1.msra.mxu0 0.0
        %673 = vmatprep.subr.mxu0 0.0
        %674 = vmatpush1.msra.mxu0 0.0
        %675 = vmatprep.subr.mxu0 0.0
        %676 = vmatpush1.msra.mxu0 0.0
        %677 = vmatprep.subr.mxu0 0.0
        %678 = vmatpush1.msra.mxu0 0.0
        %679 = vmatprep.subr.mxu0 0.0
        %680 = vmatpush1.msra.mxu0 0.0
        %681 = vmatprep.subr.mxu0 0.0
        %682 = vmatpush1.msra.mxu0 0.0
        %683 = vmatprep.subr.mxu0 0.0
        %684 = vmatpush1.msra.mxu0 0.0
        %685 = vmatprep.subr.mxu0 0.0
        %686 = vmatpush1.msra.mxu0 0.0
        %687 = vmatprep.subr.mxu0 0.0
        %688 = vmatpush1.msra.mxu0 0.0
        %689 = vmatprep.subr.mxu0 0.0
        %690 = vmatpush1.msra.mxu0 0.0
        %691 = vmatprep.subr.mxu0 0.0
        %692 = vmatpush1.msra.mxu0 0.0
        %693 = vmatprep.subr.mxu0 0.0
        %694 = vmatpush1.msra.mxu0 0.0
        %695 = vmatprep.subr.mxu0 0.0
        %696 = vmatpush1.msra.mxu0 0.0
        %697 = vmatprep.subr.mxu0 0.0
        %698 = vmatpush1.msra.mxu0 0.0
        %699 = vmatprep.subr.mxu0 0.0
        %700 = vmatpush1.msra.mxu0 0.0
        %701 = vmatprep.subr.mxu0 0.0
        %702 = vmatpush1.msra.mxu0 0.0
        %703 = vmatprep.subr.mxu0 0.0
        %704 = vmatpush1.msra.mxu0 0.0
        %705 = vmatprep.subr.mxu0 0.0
        %706 = vmatpush1.msra.mxu0 0.0
        %707 = vmatprep.mubr.f32.mxu0 0.0
        %708 = vmatmul.mubr.f32.gmra.mrb[0].mxu0 %v641
        %v709 = vpop.f32.mrb[0].mxu0
        %v710 = vadd.f32 0.0, %v709
        %v711 = vpop.f32.mrb[0].mxu0
        %712 = vdwg.mxu0
        %v713 = vld [vmem:[#allocation2] sm:$0xff]
        %vm714 = vcmask 64512
        %v716 = vsel %vm714, %v710, 0
        %718 = vmatprep.subr.mxu0 0.0
        %719 = vmatpush1.msra.mxu0 %v713
        %720 = vmatprep.subr.mxu0 0.0
        %721 = vmatpush1.msra.mxu0 0.0
        %722 = vmatprep.subr.mxu0 0.0
        %723 = vmatpush1.msra.mxu0 0.0
        %724 = vmatprep.subr.mxu0 0.0
        %725 = vmatpush1.msra.mxu0 0.0
        %726 = vmatprep.subr.mxu0 0.0
        %727 = vmatpush1.msra.mxu0 0.0
        %728 = vmatprep.subr.mxu0 0.0
        %729 = vmatpush1.msra.mxu0 0.0
        %730 = vmatprep.subr.mxu0 0.0
        %731 = vmatpush1.msra.mxu0 0.0
        %732 = vmatprep.subr.mxu0 0.0
        %733 = vmatpush1.msra.mxu0 0.0
        %734 = vmatprep.subr.mxu0 0.0
        %735 = vmatpush1.msra.mxu0 0.0
        %736 = vmatprep.subr.mxu0 0.0
        %737 = vmatpush1.msra.mxu0 0.0
        %738 = vmatprep.subr.mxu0 0.0
        %739 = vmatpush1.msra.mxu0 0.0
        %740 = vmatprep.subr.mxu0 0.0
        %741 = vmatpush1.msra.mxu0 0.0
        %742 = vmatprep.subr.mxu0 0.0
        %743 = vmatpush1.msra.mxu0 0.0
        %744 = vmatprep.subr.mxu0 0.0
        %745 = vmatpush1.msra.mxu0 0.0
        %746 = vmatprep.subr.mxu0 0.0
        %747 = vmatpush1.msra.mxu0 0.0
        %748 = vmatprep.subr.mxu0 0.0
        %749 = vmatpush1.msra.mxu0 0.0
        %750 = vmatprep.subr.mxu0 0.0
        %751 = vmatpush1.msra.mxu0 0.0
        %752 = vmatprep.subr.mxu0 0.0
        %753 = vmatpush1.msra.mxu0 0.0
        %754 = vmatprep.subr.mxu0 0.0
        %755 = vmatpush1.msra.mxu0 0.0
        %756 = vmatprep.subr.mxu0 0.0
        %757 = vmatpush1.msra.mxu0 0.0
        %758 = vmatprep.subr.mxu0 0.0
        %759 = vmatpush1.msra.mxu0 0.0
        %760 = vmatprep.subr.mxu0 0.0
        %761 = vmatpush1.msra.mxu0 0.0
        %762 = vmatprep.subr.mxu0 0.0
        %763 = vmatpush1.msra.mxu0 0.0
        %764 = vmatprep.subr.mxu0 0.0
        %765 = vmatpush1.msra.mxu0 0.0
        %766 = vmatprep.subr.mxu0 0.0
        %767 = vmatpush1.msra.mxu0 0.0
        %768 = vmatprep.subr.mxu0 0.0
        %769 = vmatpush1.msra.mxu0 0.0
        %770 = vmatprep.subr.mxu0 0.0
        %771 = vmatpush1.msra.mxu0 0.0
        %772 = vmatprep.subr.mxu0 0.0
        %773 = vmatpush1.msra.mxu0 0.0
        %774 = vmatprep.subr.mxu0 0.0
        %775 = vmatpush1.msra.mxu0 0.0
        %776 = vmatprep.subr.mxu0 0.0
        %777 = vmatpush1.msra.mxu0 0.0
        %778 = vmatprep.subr.mxu0 0.0
        %779 = vmatpush1.msra.mxu0 0.0
        %780 = vmatprep.subr.mxu0 0.0
        %781 = vmatpush1.msra.mxu0 0.0
        %782 = vmatprep.mubr.f32.mxu0 0.0
        %783 = vmatmul.mubr.f32.gmra.mrb[0].mxu0 %v716
        %v784 = vpop.f32.mrb[0].mxu0
        %v785 = vadd.f32 0.0, %v784
        %v786 = vpop.f32.mrb[0].mxu0
        %787 = vdwg.mxu0
        %v788 = vsel %vm714, %v785, -inf
        %789 = vmax.xlane.f32.xlu0 %v788
        %v790 = vpop.xlane.xlu0 %789
        %v791 = vsub.f32 %v785, %v790
        %v792 = vmul.f32 %v791, 1.442695
        %v793 = vpow.pop %v792
        %v794 = vsel %vm714, %v793, 0.0
        %795 = vadd.xlane.f32.xlu0 %v794
        %v796 = vpop.xlane.xlu0 %795
        %v797 = vld [vmem:[#allocation3] sm:$0xff]
        %v799 = vsel %vm714, %v793, 0
        %801 = vmatprep.subr.mxu0 0.0
        %802 = vmatpush1.msra.mxu0 %v797
        %803 = vmatprep.subr.mxu0 0.0
        %804 = vmatpush1.msra.mxu0 0.0
        %805 = vmatprep.subr.mxu0 0.0
        %806 = vmatpush1.msra.mxu0 0.0
        %807 = vmatprep.subr.mxu0 0.0
        %808 = vmatpush1.msra.mxu0 0.0
        %809 = vmatprep.subr.mxu0 0.0
        %810 = vmatpush1.msra.mxu0 0.0
        %811 = vmatprep.subr.mxu0 0.0
        %812 = vmatpush1.msra.mxu0 0.0
        %813 = vmatprep.subr.mxu0 0.0
        %814 = vmatpush1.msra.mxu0 0.0
        %815 = vmatprep.subr.mxu0 0.0
        %816 = vmatpush1.msra.mxu0 0.0
        %817 = vmatprep.subr.mxu0 0.0
        %818 = vmatpush1.msra.mxu0 0.0
        %819 = vmatprep.subr.mxu0 0.0
        %820 = vmatpush1.msra.mxu0 0.0
        %821 = vmatprep.subr.mxu0 0.0
        %822 = vmatpush1.msra.mxu0 0.0
        %823 = vmatprep.subr.mxu0 0.0
        %824 = vmatpush1.msra.mxu0 0.0
        %825 = vmatprep.subr.mxu0 0.0
        %826 = vmatpush1.msra.mxu0 0.0
        %827 = vmatprep.subr.mxu0 0.0
        %828 = vmatpush1.msra.mxu0 0.0
        %829 = vmatprep.subr.mxu0 0.0
        %830 = vmatpush1.msra.mxu0 0.0
        %831 = vmatprep.subr.mxu0 0.0
        %832 = vmatpush1.msra.mxu0 0.0
        %833 = vmatprep.subr.mxu0 0.0
        %834 = vmatpush1.msra.mxu0 0.0
        %835 = vmatprep.subr.mxu0 0.0
        %836 = vmatpush1.msra.mxu0 0.0
        %837 = vmatprep.subr.mxu0 0.0
        %838 = vmatpush1.msra.mxu0 0.0
        %839 = vmatprep.subr.mxu0 0.0
        %840 = vmatpush1.msra.mxu0 0.0
        %841 = vmatprep.subr.mxu0 0.0
        %842 = vmatpush1.msra.mxu0 0.0
        %843 = vmatprep.subr.mxu0 0.0
        %844 = vmatpush1.msra.mxu0 0.0
        %845 = vmatprep.subr.mxu0 0.0
        %846 = vmatpush1.msra.mxu0 0.0
        %847 = vmatprep.subr.mxu0 0.0
        %848 = vmatpush1.msra.mxu0 0.0
        %849 = vmatprep.subr.mxu0 0.0
        %850 = vmatpush1.msra.mxu0 0.0
        %851 = vmatprep.subr.mxu0 0.0
        %852 = vmatpush1.msra.mxu0 0.0
        %853 = vmatprep.subr.mxu0 0.0
        %854 = vmatpush1.msra.mxu0 0.0
        %855 = vmatprep.subr.mxu0 0.0
        %856 = vmatpush1.msra.mxu0 0.0
        %857 = vmatprep.subr.mxu0 0.0
        %858 = vmatpush1.msra.mxu0 0.0
        %859 = vmatprep.subr.mxu0 0.0
        %860 = vmatpush1.msra.mxu0 0.0
        %861 = vmatprep.subr.mxu0 0.0
        %862 = vmatpush1.msra.mxu0 0.0
        %863 = vmatprep.subr.mxu0 0.0
        %864 = vmatpush1.msra.mxu0 0.0
        %865 = vmatprep.mubr.f32.mxu0 0.0
        %866 = vmatmul.mubr.f32.gmra.mrb[0].mxu0 %v799
        %v867 = vpop.f32.mrb[0].mxu0
        %v868 = vadd.f32 0.0, %v867
        %v869 = vpop.f32.mrb[0].mxu0
        %870 = vdwg.mxu0
        %v871 = vrcp.pop %v796
        %v872 = vmul.f32 %v868, %v871
        %873 = vst.msk [vmem:[#allocation4] sm:$0xff] %vm714, %v872
        %v874 = vld [vmem:[#allocation2 + $0x8] sm:$0xff]
        %875 = vrot.lane.b32.xlu0 %v710, 120
        %v876 = vpop.permute.xlu0 %875
        %v877 = vsel %vm714, %v876, 0
        %879 = vmatprep.subr.mxu0 0.0
        %880 = vmatpush1.msra.mxu0 %v874
        %881 = vmatprep.subr.mxu0 0.0
        %882 = vmatpush1.msra.mxu0 0.0
        %883 = vmatprep.subr.mxu0 0.0
        %884 = vmatpush1.msra.mxu0 0.0
        %885 = vmatprep.subr.mxu0 0.0
        %886 = vmatpush1.msra.mxu0 0.0
        %887 = vmatprep.subr.mxu0 0.0
        %888 = vmatpush1.msra.mxu0 0.0
        %889 = vmatprep.subr.mxu0 0.0
        %890 = vmatpush1.msra.mxu0 0.0
        %891 = vmatprep.subr.mxu0 0.0
        %892 = vmatpush1.msra.mxu0 0.0
        %893 = vmatprep.subr.mxu0 0.0
        %894 = vmatpush1.msra.mxu0 0.0
        %895 = vmatprep.subr.mxu0 0.0
        %896 = vmatpush1.msra.mxu0 0.0
        %897 = vmatprep.subr.mxu0 0.0
        %898 = vmatpush1.msra.mxu0 0.0
        %899 = vmatprep.subr.mxu0 0.0
        %900 = vmatpush1.msra.mxu0 0.0
        %901 = vmatprep.subr.mxu0 0.0
        %902 = vmatpush1.msra.mxu0 0.0
        %903 = vmatprep.subr.mxu0 0.0
        %904 = vmatpush1.msra.mxu0 0.0
        %905 = vmatprep.subr.mxu0 0.0
        %906 = vmatpush1.msra.mxu0 0.0
        %907 = vmatprep.subr.mxu0 0.0
        %908 = vmatpush1.msra.mxu0 0.0
        %909 = vmatprep.subr.mxu0 0.0
        %910 = vmatpush1.msra.mxu0 0.0
        %911 = vmatprep.subr.mxu0 0.0
        %912 = vmatpush1.msra.mxu0 0.0
        %913 = vmatprep.subr.mxu0 0.0
        %914 = vmatpush1.msra.mxu0 0.0
        %915 = vmatprep.subr.mxu0 0.0
        %916 = vmatpush1.msra.mxu0 0.0
        %917 = vmatprep.subr.mxu0 0.0
        %918 = vmatpush1.msra.mxu0 0.0
        %919 = vmatprep.subr.mxu0 0.0
        %920 = vmatpush1.msra.mxu0 0.0
        %921 = vmatprep.subr.mxu0 0.0
        %922 = vmatpush1.msra.mxu0 0.0
        %923 = vmatprep.subr.mxu0 0.0
        %924 = vmatpush1.msra.mxu0 0.0
        %925 = vmatprep.subr.mxu0 0.0
        %926 = vmatpush1.msra.mxu0 0.0
        %927 = vmatprep.subr.mxu0 0.0
        %928 = vmatpush1.msra.mxu0 0.0
        %929 = vmatprep.subr.mxu0 0.0
        %930 = vmatpush1.msra.mxu0 0.0
        %931 = vmatprep.subr.mxu0 0.0
        %932 = vmatpush1.msra.mxu0 0.0
        %933 = vmatprep.subr.mxu0 0.0
        %934 = vmatpush1.msra.mxu0 0.0
        %935 = vmatprep.subr.mxu0 0.0
        %936 = vmatpush1.msra.mxu0 0.0
        %937 = vmatprep.subr.mxu0 0.0
        %938 = vmatpush1.msra.mxu0 0.0
        %939 = vmatprep.subr.mxu0 0.0
        %940 = vmatpush1.msra.mxu0 0.0
        %941 = vmatprep.subr.mxu0 0.0
        %942 = vmatpush1.msra.mxu0 0.0
        %943 = vmatprep.mubr.f32.mxu0 0.0
        %944 = vmatmul.mubr.f32.gmra.mrb[0].mxu0 %v877
        %v945 = vpop.f32.mrb[0].mxu0
        %v946 = vadd.f32 0.0, %v945
        %v947 = vpop.f32.mrb[0].mxu0
        %948 = vdwg.mxu0
        %v949 = vsel %vm714, %v946, -inf
        %950 = vmax.xlane.f32.xlu0 %v949
        %v951 = vpop.xlane.xlu0 %950
        %v952 = vsub.f32 %v946, %v951
        %v953 = vmul.f32 %v952, 1.442695
        %v954 = vpow.pop %v953
        %v955 = vsel %vm714, %v954, 0.0
        %956 = vadd.xlane.f32.xlu0 %v955
        %v957 = vpop.xlane.xlu0 %956
        %v958 = vld [vmem:[#allocation3] sm:$0xff]
        %960 = vrot.lane.b32.xlu0 %v958, 120
        %v961 = vpop.permute.xlu0 %960
        %v964 = vsel %vm714, %v954, 0
        %966 = vmatprep.subr.mxu0 0.0
        %967 = vmatpush1.msra.mxu0 %v961
        %968 = vmatprep.subr.mxu0 0.0
        %969 = vmatpush1.msra.mxu0 0.0
        %970 = vmatprep.subr.mxu0 0.0
        %971 = vmatpush1.msra.mxu0 0.0
        %972 = vmatprep.subr.mxu0 0.0
        %973 = vmatpush1.msra.mxu0 0.0
        %974 = vmatprep.subr.mxu0 0.0
        %975 = vmatpush1.msra.mxu0 0.0
        %976 = vmatprep.subr.mxu0 0.0
        %977 = vmatpush1.msra.mxu0 0.0
        %978 = vmatprep.subr.mxu0 0.0
        %979 = vmatpush1.msra.mxu0 0.0
        %980 = vmatprep.subr.mxu0 0.0
        %981 = vmatpush1.msra.mxu0 0.0
        %982 = vmatprep.subr.mxu0 0.0
        %983 = vmatpush1.msra.mxu0 0.0
        %984 = vmatprep.subr.mxu0 0.0
        %985 = vmatpush1.msra.mxu0 0.0
        %986 = vmatprep.subr.mxu0 0.0
        %987 = vmatpush1.msra.mxu0 0.0
        %988 = vmatprep.subr.mxu0 0.0
        %989 = vmatpush1.msra.mxu0 0.0
        %990 = vmatprep.subr.mxu0 0.0
        %991 = vmatpush1.msra.mxu0 0.0
        %992 = vmatprep.subr.mxu0 0.0
        %993 = vmatpush1.msra.mxu0 0.0
        %994 = vmatprep.subr.mxu0 0.0
        %995 = vmatpush1.msra.mxu0 0.0
        %996 = vmatprep.subr.mxu0 0.0
        %997 = vmatpush1.msra.mxu0 0.0
        %998 = vmatprep.subr.mxu0 0.0
        %999 = vmatpush1.msra.mxu0 0.0
        %1000 = vmatprep.subr.mxu0 0.0
        %1001 = vmatpush1.msra.mxu0 0.0
        %1002 = vmatprep.subr.mxu0 0.0
        %1003 = vmatpush1.msra.mxu0 0.0
        %1004 = vmatprep.subr.mxu0 0.0
        %1005 = vmatpush1.msra.mxu0 0.0
        %1006 = vmatprep.subr.mxu0 0.0
        %1007 = vmatpush1.msra.mxu0 0.0
        %1008 = vmatprep.subr.mxu0 0.0
        %1009 = vmatpush1.msra.mxu0 0.0
        %1010 = vmatprep.subr.mxu0 0.0
        %1011 = vmatpush1.msra.mxu0 0.0
        %1012 = vmatprep.subr.mxu0 0.0
        %1013 = vmatpush1.msra.mxu0 0.0
        %1014 = vmatprep.subr.mxu0 0.0
        %1015 = vmatpush1.msra.mxu0 0.0
        %1016 = vmatprep.subr.mxu0 0.0
        %1017 = vmatpush1.msra.mxu0 0.0
        %1018 = vmatprep.subr.mxu0 0.0
        %1019 = vmatpush1.msra.mxu0 0.0
        %1020 = vmatprep.subr.mxu0 0.0
        %1021 = vmatpush1.msra.mxu0 0.0
        %1022 = vmatprep.subr.mxu0 0.0
        %1023 = vmatpush1.msra.mxu0 0.0
        %1024 = vmatprep.subr.mxu0 0.0
        %1025 = vmatpush1.msra.mxu0 0.0
        %1026 = vmatprep.subr.mxu0 0.0
        %1027 = vmatpush1.msra.mxu0 0.0
        %1028 = vmatprep.subr.mxu0 0.0
        %1029 = vmatpush1.msra.mxu0 0.0
        %1030 = vmatprep.mubr.f32.mxu0 0.0
        %1031 = vmatmul.mubr.f32.gmra.mrb[0].mxu0 %v964
        %v1032 = vpop.f32.mrb[0].mxu0
        %v1033 = vadd.f32 0.0, %v1032
        %v1034 = vpop.f32.mrb[0].mxu0
        %1035 = vdwg.mxu0
        %v1036 = vrcp.pop %v957
        %v1037 = vmul.f32 %v1033, %v1036
        %1039 = vrot.lane.b32.xlu0 %v1037, 8
        %v1040 = vpop.permute.xlu0 %1039
        %vm1042 = vcmask 130112
        %1043 = vst.msk [vmem:[#allocation4] sm:$0xff] %vm1042, %v1040
        %v1044 = vld [vmem:[#allocation2 + $0x10] sm:$0xff]
        %1045 = vrot.lane.b32.xlu0 %v710, 112
        %v1046 = vpop.permute.xlu0 %1045
        %v1047 = vsel %vm714, %v1046, 0
        %1049 = vmatprep.subr.mxu0 0.0
        %1050 = vmatpush1.msra.mxu0 %v1044
        %1051 = vmatprep.subr.mxu0 0.0
        %1052 = vmatpush1.msra.mxu0 0.0
        %1053 = vmatprep.subr.mxu0 0.0
        %1054 = vmatpush1.msra.mxu0 0.0
        %1055 = vmatprep.subr.mxu0 0.0
        %1056 = vmatpush1.msra.mxu0 0.0
        %1057 = vmatprep.subr.mxu0 0.0
        %1058 = vmatpush1.msra.mxu0 0.0
        %1059 = vmatprep.subr.mxu0 0.0
        %1060 = vmatpush1.msra.mxu0 0.0
        %1061 = vmatprep.subr.mxu0 0.0
        %1062 = vmatpush1.msra.mxu0 0.0
        %1063 = vmatprep.subr.mxu0 0.0
        %1064 = vmatpush1.msra.mxu0 0.0
        %1065 = vmatprep.subr.mxu0 0.0
        %1066 = vmatpush1.msra.mxu0 0.0
        %1067 = vmatprep.subr.mxu0 0.0
        %1068 = vmatpush1.msra.mxu0 0.0
        %1069 = vmatprep.subr.mxu0 0.0
        %1070 = vmatpush1.msra.mxu0 0.0
        %1071 = vmatprep.subr.mxu0 0.0
        %1072 = vmatpush1.msra.mxu0 0.0
        %1073 = vmatprep.subr.mxu0 0.0
        %1074 = vmatpush1.msra.mxu0 0.0
        %1075 = vmatprep.subr.mxu0 0.0
        %1076 = vmatpush1.msra.mxu0 0.0
        %1077 = vmatprep.subr.mxu0 0.0
        %1078 = vmatpush1.msra.mxu0 0.0
        %1079 = vmatprep.subr.mxu0 0.0
        %1080 = vmatpush1.msra.mxu0 0.0
        %1081 = vmatprep.subr.mxu0 0.0
        %1082 = vmatpush1.msra.mxu0 0.0
        %1083 = vmatprep.subr.mxu0 0.0
        %1084 = vmatpush1.msra.mxu0 0.0
        %1085 = vmatprep.subr.mxu0 0.0
        %1086 = vmatpush1.msra.mxu0 0.0
        %1087 = vmatprep.subr.mxu0 0.0
        %1088 = vmatpush1.msra.mxu0 0.0
        %1089 = vmatprep.subr.mxu0 0.0
        %1090 = vmatpush1.msra.mxu0 0.0
        %1091 = vmatprep.subr.mxu0 0.0
        %1092 = vmatpush1.msra.mxu0 0.0
        %1093 = vmatprep.subr.mxu0 0.0
        %1094 = vmatpush1.msra.mxu0 0.0
        %1095 = vmatprep.subr.mxu0 0.0
        %1096 = vmatpush1.msra.mxu0 0.0
        %1097 = vmatprep.subr.mxu0 0.0
        %1098 = vmatpush1.msra.mxu0 0.0
        %1099 = vmatprep.subr.mxu0 0.0
        %1100 = vmatpush1.msra.mxu0 0.0
        %1101 = vmatprep.subr.mxu0 0.0
        %1102 = vmatpush1.msra.mxu0 0.0
        %1103 = vmatprep.subr.mxu0 0.0
        %1104 = vmatpush1.msra.mxu0 0.0
        %1105 = vmatprep.subr.mxu0 0.0
        %1106 = vmatpush1.msra.mxu0 0.0
        %1107 = vmatprep.subr.mxu0 0.0
        %1108 = vmatpush1.msra.mxu0 0.0
        %1109 = vmatprep.subr.mxu0 0.0
        %1110 = vmatpush1.msra.mxu0 0.0
        %1111 = vmatprep.subr.mxu0 0.0
        %1112 = vmatpush1.msra.mxu0 0.0
        %1113 = vmatprep.mubr.f32.mxu0 0.0
        %1114 = vmatmul.mubr.f32.gmra.mrb[0].mxu0 %v1047
        %v1115 = vpop.f32.mrb[0].mxu0
        %v1116 = vadd.f32 0.0, %v1115
        %v1117 = vpop.f32.mrb[0].mxu0
        %1118 = vdwg.mxu0
        %v1119 = vsel %vm714, %v1116, -inf
        %1120 = vmax.xlane.f32.xlu0 %v1119
        %v1121 = vpop.xlane.xlu0 %1120
        %v1122 = vsub.f32 %v1116, %v1121
        %v1123 = vmul.f32 %v1122, 1.442695
        %v1124 = vpow.pop %v1123
        %v1125 = vsel %vm714, %v1124, 0.0
        %1126 = vadd.xlane.f32.xlu0 %v1125
        %v1127 = vpop.xlane.xlu0 %1126
        %v1128 = vld [vmem:[#allocation3] sm:$0xff]
        %1130 = vrot.lane.b32.xlu0 %v1128, 112
        %v1131 = vpop.permute.xlu0 %1130
        %v1134 = vsel %vm714, %v1124, 0
        %1136 = vmatprep.subr.mxu0 0.0
        %1137 = vmatpush1.msra.mxu0 %v1131
        %1138 = vmatprep.subr.mxu0 0.0
        %1139 = vmatpush1.msra.mxu0 0.0
        %1140 = vmatprep.subr.mxu0 0.0
        %1141 = vmatpush1.msra.mxu0 0.0
        %1142 = vmatprep.subr.mxu0 0.0
        %1143 = vmatpush1.msra.mxu0 0.0
        %1144 = vmatprep.subr.mxu0 0.0
        %1145 = vmatpush1.msra.mxu0 0.0
        %1146 = vmatprep.subr.mxu0 0.0
        %1147 = vmatpush1.msra.mxu0 0.0
        %1148 = vmatprep.subr.mxu0 0.0
        %1149 = vmatpush1.msra.mxu0 0.0
        %1150 = vmatprep.subr.mxu0 0.0
        %1151 = vmatpush1.msra.mxu0 0.0
        %1152 = vmatprep.subr.mxu0 0.0
        %1153 = vmatpush1.msra.mxu0 0.0
        %1154 = vmatprep.subr.mxu0 0.0
        %1155 = vmatpush1.msra.mxu0 0.0
        %1156 = vmatprep.subr.mxu0 0.0
        %1157 = vmatpush1.msra.mxu0 0.0
        %1158 = vmatprep.subr.mxu0 0.0
        %1159 = vmatpush1.msra.mxu0 0.0
        %1160 = vmatprep.subr.mxu0 0.0
        %1161 = vmatpush1.msra.mxu0 0.0
        %1162 = vmatprep.subr.mxu0 0.0
        %1163 = vmatpush1.msra.mxu0 0.0
        %1164 = vmatprep.subr.mxu0 0.0
        %1165 = vmatpush1.msra.mxu0 0.0
        %1166 = vmatprep.subr.mxu0 0.0
        %1167 = vmatpush1.msra.mxu0 0.0
        %1168 = vmatprep.subr.mxu0 0.0
        %1169 = vmatpush1.msra.mxu0 0.0
        %1170 = vmatprep.subr.mxu0 0.0
        %1171 = vmatpush1.msra.mxu0 0.0
        %1172 = vmatprep.subr.mxu0 0.0
        %1173 = vmatpush1.msra.mxu0 0.0
        %1174 = vmatprep.subr.mxu0 0.0
        %1175 = vmatpush1.msra.mxu0 0.0
        %1176 = vmatprep.subr.mxu0 0.0
        %1177 = vmatpush1.msra.mxu0 0.0
        %1178 = vmatprep.subr.mxu0 0.0
        %1179 = vmatpush1.msra.mxu0 0.0
        %1180 = vmatprep.subr.mxu0 0.0
        %1181 = vmatpush1.msra.mxu0 0.0
        %1182 = vmatprep.subr.mxu0 0.0
        %1183 = vmatpush1.msra.mxu0 0.0
        %1184 = vmatprep.subr.mxu0 0.0
        %1185 = vmatpush1.msra.mxu0 0.0
        %1186 = vmatprep.subr.mxu0 0.0
        %1187 = vmatpush1.msra.mxu0 0.0
        %1188 = vmatprep.subr.mxu0 0.0
        %1189 = vmatpush1.msra.mxu0 0.0
        %1190 = vmatprep.subr.mxu0 0.0
        %1191 = vmatpush1.msra.mxu0 0.0
        %1192 = vmatprep.subr.mxu0 0.0
        %1193 = vmatpush1.msra.mxu0 0.0
        %1194 = vmatprep.subr.mxu0 0.0
        %1195 = vmatpush1.msra.mxu0 0.0
        %1196 = vmatprep.subr.mxu0 0.0
        %1197 = vmatpush1.msra.mxu0 0.0
        %1198 = vmatprep.subr.mxu0 0.0
        %1199 = vmatpush1.msra.mxu0 0.0
        %1200 = vmatprep.mubr.f32.mxu0 0.0
        %1201 = vmatmul.mubr.f32.gmra.mrb[0].mxu0 %v1134
        %v1202 = vpop.f32.mrb[0].mxu0
        %v1203 = vadd.f32 0.0, %v1202
        %v1204 = vpop.f32.mrb[0].mxu0
        %1205 = vdwg.mxu0
        %v1206 = vrcp.pop %v1127
        %v1207 = vmul.f32 %v1203, %v1206
        %1209 = vrot.lane.b32.xlu0 %v1207, 16
        %v1210 = vpop.permute.xlu0 %1209
        %vm1212 = vcmask 195712
        %1213 = vst.msk [vmem:[#allocation4] sm:$0xff] %vm1212, %v1210
        %v1214 = vld [vmem:[#allocation2 + $0x18] sm:$0xff]
        %1215 = vrot.lane.b32.xlu0 %v710, 104
        %v1216 = vpop.permute.xlu0 %1215
        %v1217 = vsel %vm714, %v1216, 0
        %1219 = vmatprep.subr.mxu0 0.0
        %1220 = vmatpush1.msra.mxu0 %v1214
        %1221 = vmatprep.subr.mxu0 0.0
        %1222 = vmatpush1.msra.mxu0 0.0
        %1223 = vmatprep.subr.mxu0 0.0
        %1224 = vmatpush1.msra.mxu0 0.0
        %1225 = vmatprep.subr.mxu0 0.0
        %1226 = vmatpush1.msra.mxu0 0.0
        %1227 = vmatprep.subr.mxu0 0.0
        %1228 = vmatpush1.msra.mxu0 0.0
        %1229 = vmatprep.subr.mxu0 0.0
        %1230 = vmatpush1.msra.mxu0 0.0
        %1231 = vmatprep.subr.mxu0 0.0
        %1232 = vmatpush1.msra.mxu0 0.0
        %1233 = vmatprep.subr.mxu0 0.0
        %1234 = vmatpush1.msra.mxu0 0.0
        %1235 = vmatprep.subr.mxu0 0.0
        %1236 = vmatpush1.msra.mxu0 0.0
        %1237 = vmatprep.subr.mxu0 0.0
        %1238 = vmatpush1.msra.mxu0 0.0
        %1239 = vmatprep.subr.mxu0 0.0
        %1240 = vmatpush1.msra.mxu0 0.0
        %1241 = vmatprep.subr.mxu0 0.0
        %1242 = vmatpush1.msra.mxu0 0.0
        %1243 = vmatprep.subr.mxu0 0.0
        %1244 = vmatpush1.msra.mxu0 0.0
        %1245 = vmatprep.subr.mxu0 0.0
        %1246 = vmatpush1.msra.mxu0 0.0
        %1247 = vmatprep.subr.mxu0 0.0
        %1248 = vmatpush1.msra.mxu0 0.0
        %1249 = vmatprep.subr.mxu0 0.0
        %1250 = vmatpush1.msra.mxu0 0.0
        %1251 = vmatprep.subr.mxu0 0.0
        %1252 = vmatpush1.msra.mxu0 0.0
        %1253 = vmatprep.subr.mxu0 0.0
        %1254 = vmatpush1.msra.mxu0 0.0
        %1255 = vmatprep.subr.mxu0 0.0
        %1256 = vmatpush1.msra.mxu0 0.0
        %1257 = vmatprep.subr.mxu0 0.0
        %1258 = vmatpush1.msra.mxu0 0.0
        %1259 = vmatprep.subr.mxu0 0.0
        %1260 = vmatpush1.msra.mxu0 0.0
        %1261 = vmatprep.subr.mxu0 0.0
        %1262 = vmatpush1.msra.mxu0 0.0
        %1263 = vmatprep.subr.mxu0 0.0
        %1264 = vmatpush1.msra.mxu0 0.0
        %1265 = vmatprep.subr.mxu0 0.0
        %1266 = vmatpush1.msra.mxu0 0.0
        %1267 = vmatprep.subr.mxu0 0.0
        %1268 = vmatpush1.msra.mxu0 0.0
        %1269 = vmatprep.subr.mxu0 0.0
        %1270 = vmatpush1.msra.mxu0 0.0
        %1271 = vmatprep.subr.mxu0 0.0
        %1272 = vmatpush1.msra.mxu0 0.0
        %1273 = vmatprep.subr.mxu0 0.0
        %1274 = vmatpush1.msra.mxu0 0.0
        %1275 = vmatprep.subr.mxu0 0.0
        %1276 = vmatpush1.msra.mxu0 0.0
        %1277 = vmatprep.subr.mxu0 0.0
        %1278 = vmatpush1.msra.mxu0 0.0
        %1279 = vmatprep.subr.mxu0 0.0
        %1280 = vmatpush1.msra.mxu0 0.0
        %1281 = vmatprep.subr.mxu0 0.0
        %1282 = vmatpush1.msra.mxu0 0.0
        %1283 = vmatprep.mubr.f32.mxu0 0.0
        %1284 = vmatmul.mubr.f32.gmra.mrb[0].mxu0 %v1217
        %v1285 = vpop.f32.mrb[0].mxu0
        %v1286 = vadd.f32 0.0, %v1285
        %v1287 = vpop.f32.mrb[0].mxu0
        %1288 = vdwg.mxu0
        %v1289 = vsel %vm714, %v1286, -inf
        %1290 = vmax.xlane.f32.xlu0 %v1289
        %v1291 = vpop.xlane.xlu0 %1290
        %v1292 = vsub.f32 %v1286, %v1291
        %v1293 = vmul.f32 %v1292, 1.442695
        %v1294 = vpow.pop %v1293
        %v1295 = vsel %vm714, %v1294, 0.0
        %1296 = vadd.xlane.f32.xlu0 %v1295
        %v1297 = vpop.xlane.xlu0 %1296
        %v1298 = vld [vmem:[#allocation3] sm:$0xff]
        %1300 = vrot.lane.b32.xlu0 %v1298, 104
        %v1301 = vpop.permute.xlu0 %1300
        %v1304 = vsel %vm714, %v1294, 0
        %1306 = vmatprep.subr.mxu0 0.0
        %1307 = vmatpush1.msra.mxu0 %v1301
        %1308 = vmatprep.subr.mxu0 0.0
        %1309 = vmatpush1.msra.mxu0 0.0
        %1310 = vmatprep.subr.mxu0 0.0
        %1311 = vmatpush1.msra.mxu0 0.0
        %1312 = vmatprep.subr.mxu0 0.0
        %1313 = vmatpush1.msra.mxu0 0.0
        %1314 = vmatprep.subr.mxu0 0.0
        %1315 = vmatpush1.msra.mxu0 0.0
        %1316 = vmatprep.subr.mxu0 0.0
        %1317 = vmatpush1.msra.mxu0 0.0
        %1318 = vmatprep.subr.mxu0 0.0
        %1319 = vmatpush1.msra.mxu0 0.0
        %1320 = vmatprep.subr.mxu0 0.0
        %1321 = vmatpush1.msra.mxu0 0.0
        %1322 = vmatprep.subr.mxu0 0.0
        %1323 = vmatpush1.msra.mxu0 0.0
        %1324 = vmatprep.subr.mxu0 0.0
        %1325 = vmatpush1.msra.mxu0 0.0
        %1326 = vmatprep.subr.mxu0 0.0
        %1327 = vmatpush1.msra.mxu0 0.0
        %1328 = vmatprep.subr.mxu0 0.0
        %1329 = vmatpush1.msra.mxu0 0.0
        %1330 = vmatprep.subr.mxu0 0.0
        %1331 = vmatpush1.msra.mxu0 0.0
        %1332 = vmatprep.subr.mxu0 0.0
        %1333 = vmatpush1.msra.mxu0 0.0
        %1334 = vmatprep.subr.mxu0 0.0
        %1335 = vmatpush1.msra.mxu0 0.0
        %1336 = vmatprep.subr.mxu0 0.0
        %1337 = vmatpush1.msra.mxu0 0.0
        %1338 = vmatprep.subr.mxu0 0.0
        %1339 = vmatpush1.msra.mxu0 0.0
        %1340 = vmatprep.subr.mxu0 0.0
        %1341 = vmatpush1.msra.mxu0 0.0
        %1342 = vmatprep.subr.mxu0 0.0
        %1343 = vmatpush1.msra.mxu0 0.0
        %1344 = vmatprep.subr.mxu0 0.0
        %1345 = vmatpush1.msra.mxu0 0.0
        %1346 = vmatprep.subr.mxu0 0.0
        %1347 = vmatpush1.msra.mxu0 0.0
        %1348 = vmatprep.subr.mxu0 0.0
        %1349 = vmatpush1.msra.mxu0 0.0
        %1350 = vmatprep.subr.mxu0 0.0
        %1351 = vmatpush1.msra.mxu0 0.0
        %1352 = vmatprep.subr.mxu0 0.0
        %1353 = vmatpush1.msra.mxu0 0.0
        %1354 = vmatprep.subr.mxu0 0.0
        %1355 = vmatpush1.msra.mxu0 0.0
        %1356 = vmatprep.subr.mxu0 0.0
        %1357 = vmatpush1.msra.mxu0 0.0
        %1358 = vmatprep.subr.mxu0 0.0
        %1359 = vmatpush1.msra.mxu0 0.0
        %1360 = vmatprep.subr.mxu0 0.0
        %1361 = vmatpush1.msra.mxu0 0.0
        %1362 = vmatprep.subr.mxu0 0.0
        %1363 = vmatpush1.msra.mxu0 0.0
        %1364 = vmatprep.subr.mxu0 0.0
        %1365 = vmatpush1.msra.mxu0 0.0
        %1366 = vmatprep.subr.mxu0 0.0
        %1367 = vmatpush1.msra.mxu0 0.0
        %1368 = vmatprep.subr.mxu0 0.0
        %1369 = vmatpush1.msra.mxu0 0.0
        %1370 = vmatprep.mubr.f32.mxu0 0.0
        %1371 = vmatmul.mubr.f32.gmra.mrb[0].mxu0 %v1304
        %v1372 = vpop.f32.mrb[0].mxu0
        %v1373 = vadd.f32 0.0, %v1372
        %v1374 = vpop.f32.mrb[0].mxu0
        %1375 = vdwg.mxu0
        %v1376 = vrcp.pop %v1297
        %v1377 = vmul.f32 %v1373, %v1376
        %1379 = vrot.lane.b32.xlu0 %v1377, 24
        %v1380 = vpop.permute.xlu0 %1379
        %vm1382 = vcmask 261312
        %1383 = vst.msk [vmem:[#allocation4] sm:$0xff] %vm1382, %v1380
        %v1384 = vld [vmem:[#allocation4] sm:$0xff]
        %v1385 = vld [vmem:[#allocation16] sm:$0xff]
        %v1386 = vld [vmem:[#allocation16 + $0x8] sm:$0xff]
        %v1387 = vld [vmem:[#allocation16 + $0x10] sm:$0xff]
        %v1388 = vld [vmem:[#allocation16 + $0x18] sm:$0xff]
        %v1390 = vsel %vm639, %v1384, 0
        %1392 = vmatprep.subr.mxu0 0.0
        %1393 = vmatpush1.msra.mxu0 %v1385
        %1394 = vmatprep.subr.mxu0 0.0
        %1395 = vmatpush1.msra.mxu0 %v1386
        %1396 = vmatprep.subr.mxu0 0.0
        %1397 = vmatpush1.msra.mxu0 %v1387
        %1398 = vmatprep.subr.mxu0 0.0
        %1399 = vmatpush1.msra.mxu0 %v1388
        %1400 = vmatprep.subr.mxu0 0.0
        %1401 = vmatpush1.msra.mxu0 0.0
        %1402 = vmatprep.subr.mxu0 0.0
        %1403 = vmatpush1.msra.mxu0 0.0
        %1404 = vmatprep.subr.mxu0 0.0
        %1405 = vmatpush1.msra.mxu0 0.0
        %1406 = vmatprep.subr.mxu0 0.0
        %1407 = vmatpush1.msra.mxu0 0.0
        %1408 = vmatprep.subr.mxu0 0.0
        %1409 = vmatpush1.msra.mxu0 0.0
        %1410 = vmatprep.subr.mxu0 0.0
        %1411 = vmatpush1.msra.mxu0 0.0
        %1412 = vmatprep.subr.mxu0 0.0
        %1413 = vmatpush1.msra.mxu0 0.0
        %1414 = vmatprep.subr.mxu0 0.0
        %1415 = vmatpush1.msra.mxu0 0.0
        %1416 = vmatprep.subr.mxu0 0.0
        %1417 = vmatpush1.msra.mxu0 0.0
        %1418 = vmatprep.subr.mxu0 0.0
        %1419 = vmatpush1.msra.mxu0 0.0
        %1420 = vmatprep.subr.mxu0 0.0
        %1421 = vmatpush1.msra.mxu0 0.0
        %1422 = vmatprep.subr.mxu0 0.0
        %1423 = vmatpush1.msra.mxu0 0.0
        %1424 = vmatprep.subr.mxu0 0.0
        %1425 = vmatpush1.msra.mxu0 0.0
        %1426 = vmatprep.subr.mxu0 0.0
        %1427 = vmatpush1.msra.mxu0 0.0
        %1428 = vmatprep.subr.mxu0 0.0
        %1429 = vmatpush1.msra.mxu0 0.0
        %1430 = vmatprep.subr.mxu0 0.0
        %1431 = vmatpush1.msra.mxu0 0.0
        %1432 = vmatprep.subr.mxu0 0.0
        %1433 = vmatpush1.msra.mxu0 0.0
        %1434 = vmatprep.subr.mxu0 0.0
        %1435 = vmatpush1.msra.mxu0 0.0
        %1436 = vmatprep.subr.mxu0 0.0
        %1437 = vmatpush1.msra.mxu0 0.0
        %1438 = vmatprep.subr.mxu0 0.0
        %1439 = vmatpush1.msra.mxu0 0.0
        %1440 = vmatprep.subr.mxu0 0.0
        %1441 = vmatpush1.msra.mxu0 0.0
        %1442 = vmatprep.subr.mxu0 0.0
        %1443 = vmatpush1.msra.mxu0 0.0
        %1444 = vmatprep.subr.mxu0 0.0
        %1445 = vmatpush1.msra.mxu0 0.0
        %1446 = vmatprep.subr.mxu0 0.0
        %1447 = vmatpush1.msra.mxu0 0.0
        %1448 = vmatprep.subr.mxu0 0.0
        %1449 = vmatpush1.msra.mxu0 0.0
        %1450 = vmatprep.subr.mxu0 0.0
        %1451 = vmatpush1.msra.mxu0 0.0
        %1452 = vmatprep.subr.mxu0 0.0
        %1453 = vmatpush1.msra.mxu0 0.0
        %1454 = vmatprep.subr.mxu0 0.0
        %1455 = vmatpush1.msra.mxu0 0.0
        %1456 = vmatprep.mubr.f32.mxu0 0.0
        %1457 = vmatmul.mubr.f32.gmra.mrb[0].mxu0 %v1390
        %v1458 = vpop.f32.mrb[0].mxu0
        %v1459 = vadd.f32 0.0, %v1458
        %v1460 = vpop.f32.mrb[0].mxu0
        %1461 = vdwg.mxu0
        %1462 = vst.msk [vmem:[%s439] sm:$0xff] %vm639, %v1459
        %s1463 = sand.u32 %s215, 1
        %s1464 = scalar_lea.sflag [#allocation7], %s1463
        %s1465 = sand.u32 %s215, 1
        %s1466 = smul.addr %s1465, 8
        %s1467 = scalar_lea.vmem [#allocation17], %s1466
        // Predicated region
        $region81: #{tpu_custom_call.1} parent=47 // pred_check
          %p1468 = pneg %p225
        $region82: #{tpu_custom_call.1} parent=47 // pred_check_branch
          %1470 = sbr.rel (%p1468) target = $region84
        $region83: #{tpu_custom_call.1} parent=47 // pred_region
          %s1472 = ssub.s32 128, 128
          %1473 = vsyncadd %s1464, %s1472
          %s1474 = sadd.s32 %s34, %s33
          %s1475 = smul.addr %s1474, 128
          %s1476 = scalar_lea.hbm %s7, %s1475
          %s1478 = sshll.u32 %s1467, 4
          %s1479 = int_to_ptr.vmem [resolvable:$true] %s1478
          %1481 = dma.vmem_to_hbm [thread:$0]  %s1479, 128, %s1476, %s1464
        $region84: #{tpu_custom_call.1} parent=47 // pred_fallthru
          _
      $region48: #{tpu_custom_call.1} parent=5 // pred_fallthru
        _
      %p1482 = scmp.le.s32.totalorder 2, %s24
      // Predicated region
      $region85: #{tpu_custom_call.1} parent=5 // pred_check
        %p1483 = pneg %p1482
      $region86: #{tpu_custom_call.1} parent=5 // pred_check_branch
        %1485 = sbr.rel (%p1483) target = $region88
      $region87: #{tpu_custom_call.1} parent=5 // pred_region
        %s1486 = ssub.s32 %s24, 2
        // Predicated region
        $region89: #{tpu_custom_call.1} parent=87 // pred_check
          %p1487 = pneg %p231
        $region90: #{tpu_custom_call.1} parent=87 // pred_check_branch
          %1489 = sbr.rel (%p1487) target = $region92
        $region91: #{tpu_custom_call.1} parent=87 // pred_region
          %s1490 = sand.u32 %s216, 1
          %s1491 = scalar_lea.sflag [#allocation7], %s1490
          %s1492 = sand.u32 %s216, 1
          %s1493 = smul.addr %s1492, 8
          %s1494 = scalar_lea.vmem [#allocation17], %s1493
          %1495 = dma.done %s1491, 128
        $region92: #{tpu_custom_call.1} parent=87 // pred_fallthru
          _
      $region88: #{tpu_custom_call.1} parent=5 // pred_fallthru
        _
    $region6: #{tpu_custom_call.1} parent=1 // loop_footer
      %s28 = sadd.s32 1, %s24
    $region7: #{tpu_custom_call.1} parent=1 // loop_footer_branch
      %23 = sbr.rel target = $region3
    $region8: #{tpu_custom_call.1} parent=1 // loop_exit
      _
    %1496 = vsyncpa [#allocation6], 1
    %s1497 = scalar_lea.sflag [#allocation6], 1
    %1498 = vsyncpa %s1497, 1
    %1499 = vsyncpa [#allocation9], 1
    %s1500 = scalar_lea.sflag [#allocation9], 1
    %1501 = vsyncpa %s1500, 1
    %1502 = vsyncpa [#allocation12], 1
    %1503 = vsyncpa [#allocation15], 1
    %1504 = vsyncpa [#allocation7], 1
    %s1505 = scalar_lea.sflag [#allocation7], 1
    %1506 = vsyncpa %s1505, 1

</llo_original>
